<compile_context>
chip_gen: v6e
topology: v6e:2x2x1
jax: 0.10.0
libtpu: 0.0.40
codegen_flags: <defaults>
</compile_context>

<pallas_src>
import functools

import jax
import jax.numpy as jnp
import numpy as np
from jax import lax
from jax.experimental import pallas as pl
from jax.experimental.pallas import tpu as pltpu


# ---------------------------------------------------------------------------
# Kernel 1: polyphase "2x-upsample + 5x5 conv" as ONE MXU contraction per row
# tile, plus BN partial statistics accumulated across the row-tile axis.
#
#   x_ref    : (1, tile_u, W, 9*Cin)   im2col'ed pre-upsample x (dot dtype)
#                x_ref[0, u, v, (ey*3+ex)*Cin + ci] = xpad[u+ey, v+ex, ci]
#   w_ref    : (9*Cin, 4*Cout)         folded weights (dot dtype); column
#                index = a*2*Cout + b*Cout + co  (a/b = output row/col parity)
#   conv_ref : (1, tile_u, W, 4*Cout)  folded conv result (store dtype);
#                                      single lane-dense (128-wide) store
#   sum_ref  : (1, 1, 4*Cout) f32      per-(a,b,co) sum,    resident over h
#   sq_ref   : (1, 1, 4*Cout) f32      per-(a,b,co) sum-sq, resident over h
# ---------------------------------------------------------------------------
def conv_poly_kernel(x_ref, w_ref, conv_ref, sum_ref, sq_ref):
    @pl.when(pl.program_id(1) == 0)
    def _():
        sum_ref[...] = jnp.zeros_like(sum_ref)
        sq_ref[...] = jnp.zeros_like(sq_ref)

    # Single contraction: K = 9*Cin, N = 4*Cout (lane-dense), M = tile_u*W.
    res = lax.dot_general(
        x_ref[0], w_ref[...],
        dimension_numbers=(((2,), (0,)), ((), ())),
        preferred_element_type=jnp.float32)            # (tile_u, W, 4*Cout) f32

    conv_ref[0] = res.astype(conv_ref.dtype)

    # BN partial statistics (training-mode batch stats), accumulated in the
    # VMEM-resident output block across the (arbitrary) row-tile grid axis.
    r2 = res.reshape(-1, res.shape[-1])
    sum_ref[...] += jnp.sum(r2, axis=0).reshape(1, 1, -1)
    sq_ref[...] += jnp.sum(r2 * r2, axis=0).reshape(1, 1, -1)


# ---------------------------------------------------------------------------
# Kernel 2: fused BatchNorm affine + ReLU over the lane-dense folded layout.
#   conv_ref          : (1, tile_u, W, 4*Cout)   (bf16 or f32)
#   scale_ref/shift_ref: (1, 4*Cout) f32         BN affine, tiled over (a, b)
#   act_ref           : (1, tile_u, W, 4*Cout) f32, single lane-dense store
# ---------------------------------------------------------------------------
def bn_relu_kernel(conv_ref, scale_ref, shift_ref, act_ref):
    conv = conv_ref[0].astype(jnp.float32)     # upcast (v5e has no bf16 VPU)
    act_ref[0] = jnp.maximum(conv * scale_ref[0] + shift_ref[0], 0.0)


def _fold_weights(weight):
    """Fold the 5x5 HWIO kernel into phase-separated effective 3x3 weights.

    Returns (9*Cin, 4*Cout) with
      wfold[(ey*3+ex)*Cin + ci, a*2*Cout + b*Cout + co]
        = sum_{dy: (a+dy)//2==ey} sum_{dx: (b+dx)//2==ex} weight[dy, dx, ci, co]
    """
    cin, cout = weight.shape[2], weight.shape[3]
    sel = np.zeros((2, 3, 5), np.float32)
    for a in range(2):
        for d in range(5):
            sel[a, (a + d) // 2, d] = 1.0
    sel = jnp.asarray(sel)
    # weff[a, b, ey, ex, ci, co]
    weff = jnp.einsum("aed,bfx,dxio->abefio", sel, sel, weight)
    wfold = jnp.transpose(weff, (2, 3, 4, 0, 1, 5))      # (ey, ex, ci, a, b, co)
    return wfold.reshape(9 * cin, 4 * cout)


def _pick_tile_u(h, requested):
    """Largest multiple-of-8 divisor of h that is <= requested (else h)."""
    best = None
    for cand in range(8, min(requested, h) + 1, 8):
        if h % cand == 0:
            best = cand
    return best if best is not None else h


def _vmem_limit(block_bytes):
    # 2x double buffering + 2x headroom; capped under v7x's 64 MiB VMEM.
    return int(min(max(4 * block_bytes, 4 * 1024 * 1024), 48 * 1024 * 1024))


# ---------------------------------------------------------------------------
# Wrapper: UnetUpConv.forward
# ---------------------------------------------------------------------------
@functools.partial(jax.jit,
                   static_argnames=("eps", "tile_u", "dot_dtype", "conv_dtype"))
def unet_up_conv(x_nchw, y_nchw, weight, bias, gamma, beta, eps=1e-5,
                 tile_u=16, dot_dtype=jnp.bfloat16, conv_dtype=jnp.bfloat16):
    """x: (N,Cin,H,W); y: (N,Cy,2H,2W); weight: (5,5,Cin,Cout) HWIO.

    `bias` is accepted for interface parity but dropped: training-mode
    BatchNorm subtracts the batch mean, so a constant per-channel bias cancels
    exactly.
    """
    del bias
    N, Cin, H, W = x_nchw.shape
    Cout = weight.shape[3]
    Cy = y_nchw.shape[1]
    H2, W2 = 2 * H, 2 * W

    tile_u = _pick_tile_u(H, tile_u)      # default 16 -> matmul M = tile_u*W
    HT = H // tile_u
    c4 = 4 * Cout

    # --- small-input preprocessing (all on the 1/4-sized pre-upsample x) -----
    x_nhwc = jnp.transpose(x_nchw, (0, 2, 3, 1))                  # (N,H,W,Cin)
    xp = jnp.pad(x_nhwc, ((0, 0), (1, 1), (1, 1), (0, 0)))        # (N,H+2,W+2,Cin)
    # im2col of the 3x3 window -> contraction dim K = 9*Cin; per-tile x blocks
    # are then halo-free and O(tile_u) in VMEM.
    xpe = jnp.concatenate(
        [xp[:, ey:ey + H, ex:ex + W, :] for ey in range(3) for ex in range(3)],
        axis=-1).astype(dot_dtype)                                # (N,H,W,9*Cin)
    wfold = _fold_weights(weight).astype(dot_dtype)               # (9*Cin, 4*Cout)

    dsz = np.dtype(dot_dtype).itemsize
    csz = np.dtype(conv_dtype).itemsize

    # --- conv + BN partial stats ---------------------------------------------
    blk1 = (tile_u * W * 9 * Cin * dsz + 9 * Cin * c4 * dsz
            + tile_u * W * c4 * csz + 2 * c4 * 4)
    cparams1 = pltpu.CompilerParams(
        dimension_semantics=("parallel", "arbitrary"),  # h revisits the stats block
        vmem_limit_bytes=_vmem_limit(blk1))

    conv_fold, ssum, ssq = pl.pallas_call(
        conv_poly_kernel,
        out_shape=(
            jax.ShapeDtypeStruct((N, H, W, c4), conv_dtype),
            jax.ShapeDtypeStruct((N, 1, c4), jnp.float32),
            jax.ShapeDtypeStruct((N, 1, c4), jnp.float32),
        ),
        grid=(N, HT),
        in_specs=[
            pl.BlockSpec((1, tile_u, W, 9 * Cin), lambda n, h: (n, h, 0, 0)),
            pl.BlockSpec((9 * Cin, c4), lambda n, h: (0, 0)),
        ],
        out_specs=(
            pl.BlockSpec((1, tile_u, W, c4), lambda n, h: (n, h, 0, 0)),
            pl.BlockSpec((1, 1, c4), lambda n, h: (n, 0, 0)),
            pl.BlockSpec((1, 1, c4), lambda n, h: (n, 0, 0)),
        ),
        compiler_params=cparams1,
    )(xpe, wfold)

    # --- BatchNorm batch statistics (biased variance, training mode) ---------
    # Single-pass E[x^2] - E[x]^2 in f32; acceptable here since the conv
    # output is roughly zero-mean (bias dropped).
    # TODO(synk): switch to Welford/two-pass if run on large-mean activations.
    cnt = float(N * H2 * W2)
    s = jnp.sum(ssum, axis=(0, 1)).reshape(4, Cout).sum(0)   # per-channel sum
    q = jnp.sum(ssq, axis=(0, 1)).reshape(4, Cout).sum(0)    # per-channel sumsq
    mean = s / cnt
    var = jnp.maximum(q / cnt - mean * mean, 0.0)
    scale = gamma * lax.rsqrt(var + eps)
    shift = beta - mean * scale
    scale4 = jnp.tile(scale, 4).reshape(1, c4)
    shift4 = jnp.tile(shift, 4).reshape(1, c4)

    # --- fused BN affine + ReLU over the lane-dense folded layout ------------
    blk2 = tile_u * W * c4 * (csz + 4) + 2 * c4 * 4
    cparams2 = pltpu.CompilerParams(
        dimension_semantics=("parallel", "parallel"),
        vmem_limit_bytes=_vmem_limit(blk2))

    act_fold = pl.pallas_call(
        bn_relu_kernel,
        out_shape=jax.ShapeDtypeStruct((N, H, W, c4), jnp.float32),
        grid=(N, HT),
        in_specs=[
            pl.BlockSpec((1, tile_u, W, c4), lambda n, h: (n, h, 0, 0)),
            pl.BlockSpec((1, c4), lambda n, h: (0, 0)),
            pl.BlockSpec((1, c4), lambda n, h: (0, 0)),
        ],
        out_specs=pl.BlockSpec((1, tile_u, W, c4), lambda n, h: (n, h, 0, 0)),
        compiler_params=cparams2,
    )(conv_fold, scale4, shift4)

    # --- epilogue (one fused XLA layout pass) ---------------------------------
    # Un-fold the polyphase layout to NCHW and concatenate y (kept NCHW the
    # whole way, so it is read and written exactly once).
    # act_fold[n, u, v, a, b, co] -> act_nchw[n, co, 2u+a, 2v+b]
    act6 = act_fold.reshape(N, H, W, 2, 2, Cout)
    act_nchw = jnp.transpose(act6, (0, 5, 1, 3, 2, 4)).reshape(N, Cout, H2, W2)
    # TODO(synk): for 2*W >= 128, emit NCHW directly from bn_relu_kernel and
    # drop this transpose pass as well.
    return jnp.concatenate([act_nchw, y_nchw], axis=1)


# ---------------------------------------------------------------------------
# Plain-JAX reference (independent of the polyphase math): upsample, 5x5 SAME
# conv (+bias), two-pass training-mode BN, ReLU, concat.
# ---------------------------------------------------------------------------
def reference(x_nchw, y_nchw, weight, bias, gamma, beta, eps=1e-5):
    x = jnp.transpose(x_nchw, (0, 2, 3, 1))
    x_up = jnp.repeat(jnp.repeat(x, 2, axis=1), 2, axis=2)
    conv = lax.conv_general_dilated(
        x_up, weight, window_strides=(1, 1), padding="SAME",
        dimension_numbers=("NHWC", "HWIO", "NHWC")) + bias
    mean = jnp.mean(conv, axis=(0, 1, 2))
    var = jnp.mean(jnp.square(conv - mean), axis=(0, 1, 2))
    act = jnp.maximum((conv - mean) * lax.rsqrt(var + eps) * gamma + beta, 0.0)
    out = jnp.concatenate([act, jnp.transpose(y_nchw, (0, 2, 3, 1))], axis=-1)
    return jnp.transpose(out, (0, 3, 1, 2))


if __name__ == "__main__":
    N, Cin, Cout, Cy, H, W = 2, 8, 32, 16, 16, 16

    key = jax.random.PRNGKey(0)
    kx, ky, kw, kb, kg, kbe = jax.random.split(key, 6)

    x = jax.random.normal(kx, (N, Cin, H, W), dtype=jnp.float32)
    y = jax.random.normal(ky, (N, Cy, 2 * H, 2 * W), dtype=jnp.float32)

    # Parameter shapes from nn.Conv2d(Cin, Cout, 5) + nn.BatchNorm2d(Cout).
    weight = 0.1 * jax.random.normal(kw, (5, 5, Cin, Cout), dtype=jnp.float32)  # HWIO
    bias = 0.1 * jax.random.normal(kb, (Cout,), dtype=jnp.float32)
    gamma = 1.0 + 0.1 * jax.random.normal(kg, (Cout,), dtype=jnp.float32)
    beta = 0.1 * jax.random.normal(kbe, (Cout,), dtype=jnp.float32)

    ref = reference(x, y, weight, bias, gamma, beta)

    # Exact-math validation run: f32 MXU operands + f32 conv intermediate.
    out_f32 = unet_up_conv(x, y, weight, bias, gamma, beta,
                           dot_dtype=jnp.float32, conv_dtype=jnp.float32)
    jax.block_until_ready(out_f32)
    assert out_f32.shape == (N, Cout + Cy, 2 * H, 2 * W), out_f32.shape
    np.testing.assert_allclose(np.asarray(out_f32), np.asarray(ref),
                               rtol=2e-4, atol=2e-4)

    # Default fast path: bf16 MXU operands + bf16 conv intermediate (f32 acc).
    out = unet_up_conv(x, y, weight, bias, gamma, beta)
    jax.block_until_ready(out)
    assert out.shape == (N, Cout + Cy, 2 * H, 2 * W), out.shape
    np.testing.assert_allclose(np.asarray(out), np.asarray(ref),
                               rtol=5e-2, atol=5e-2)

    print("KERNEL_OK")
</pallas_src>

<mosaic_0001>
module attributes {stable_mosaic.version = 11 : i64} {
  func.func @conv_poly_kernel(%arg0: i32, %arg1: i32, %arg2: memref<1x16x16x72xf32, #tpu.memory_space<vmem>>, %arg3: memref<72x128xf32, #tpu.memory_space<vmem>>, %arg4: memref<1x16x16x128xf32, #tpu.memory_space<vmem>>, %arg5: memref<1x1x128xf32, #tpu.memory_space<vmem>>, %arg6: memref<1x1x128xf32, #tpu.memory_space<vmem>>) attributes {dimension_semantics = [#tpu.dimension_semantics<parallel>, #tpu.dimension_semantics<arbitrary>], iteration_bounds = array<i64: 2, 1>, scalar_prefetch = 0 : i64, scratch_operands = 0 : i64, tpu.core_type = #tpu.core_type<tc>, window_params = [{transform_indices = @transform_0, window_bounds = array<i64: 1, 16, 16, 72>}, {pipeline_mode = #tpu.pipeline_mode<synchronous>, transform_indices = @transform_1, window_bounds = array<i64: 72, 128>}, {transform_indices = @transform_2, window_bounds = array<i64: 1, 16, 16, 128>}, {transform_indices = @transform_3, window_bounds = array<i64: 1, 1, 128>}, {transform_indices = @transform_4, window_bounds = array<i64: 1, 1, 128>}]} {
    %c0_i32 = arith.constant 0 : i32
    %0 = arith.cmpi eq, %arg1, %c0_i32 : i32
    %1 = arith.extui %0 : i1 to i32
    %c0_i32_0 = arith.constant 0 : i32
    %2 = arith.cmpi ne, %1, %c0_i32_0 : i32
    scf.if %2 {
      %cst_24 = arith.constant 0.000000e+00 : f32
      %22 = vector.broadcast %cst_24 : f32 to vector<1x1x128xf32>
      %c0_25 = arith.constant 0 : index
      %c0_26 = arith.constant 0 : index
      %c0_27 = arith.constant 0 : index
      %23 = vector.load %arg5[%c0_25, %c0_26, %c0_27] : memref<1x1x128xf32, #tpu.memory_space<vmem>>, vector<1x1x128xf32>
      tpu.vector_store %arg5[%c0_25, %c0_26, %c0_27], %22 {strides = array<i32>} : memref<1x1x128xf32, #tpu.memory_space<vmem>>, vector<1x1x128xf32>,
      %cst_28 = arith.constant 0.000000e+00 : f32
      %24 = vector.broadcast %cst_28 : f32 to vector<1x1x128xf32>
      %c0_29 = arith.constant 0 : index
      %c0_30 = arith.constant 0 : index
      %c0_31 = arith.constant 0 : index
      %25 = vector.load %arg6[%c0_29, %c0_30, %c0_31] : memref<1x1x128xf32, #tpu.memory_space<vmem>>, vector<1x1x128xf32>
      tpu.vector_store %arg6[%c0_29, %c0_30, %c0_31], %24 {strides = array<i32>} : memref<1x1x128xf32, #tpu.memory_space<vmem>>, vector<1x1x128xf32>,
    } else {
    }
    %c0 = arith.constant 0 : index
    %c0_1 = arith.constant 0 : index
    %c0_2 = arith.constant 0 : index
    %c0_3 = arith.constant 0 : index
    %3 = vector.load %arg2[%c0, %c0_1, %c0_2, %c0_3] : memref<1x16x16x72xf32, #tpu.memory_space<vmem>>, vector<1x16x16x72xf32>
    %4 = vector.shape_cast %3 : vector<1x16x16x72xf32> to vector<16x16x72xf32>
    %c0_4 = arith.constant 0 : index
    %c0_5 = arith.constant 0 : index
    %5 = vector.load %arg3[%c0_4, %c0_5] : memref<72x128xf32, #tpu.memory_space<vmem>>, vector<72x128xf32>
    %cst = arith.constant dense<0.000000e+00> : vector<16x16x128xf32>
    %6 = tpu.matmul %4, %5, %cst {dimension_numbers = #tpu.dot_dimension_numbers<[2], [0], [0, 1], [1], [0, 0, 0, 1, 1, 1], [], []>} : vector<16x16x72xf32>, vector<72x128xf32>, vector<16x16x128xf32> -> vector<16x16x128xf32>
    %c0_6 = arith.constant 0 : index
    %c0_7 = arith.constant 0 : index
    %c0_8 = arith.constant 0 : index
    %c0_9 = arith.constant 0 : index
    %7 = vector.load %arg4[%c0_6, %c0_7, %c0_8, %c0_9] : memref<1x16x16x128xf32, #tpu.memory_space<vmem>>, vector<1x16x16x128xf32>
    %8 = vector.shape_cast %7 : vector<1x16x16x128xf32> to vector<16x16x128xf32>
    %9 = vector.shape_cast %6 : vector<16x16x128xf32> to vector<1x16x16x128xf32>
    tpu.vector_store %arg4[%c0_6, %c0_7, %c0_8, %c0_9], %9 {strides = array<i32>} : memref<1x16x16x128xf32, #tpu.memory_space<vmem>>, vector<1x16x16x128xf32>,
    %10 = vector.shape_cast %6 : vector<16x16x128xf32> to vector<256x128xf32>
    %c0_10 = arith.constant 0 : index
    %c0_11 = arith.constant 0 : index
    %c0_12 = arith.constant 0 : index
    %11 = vector.load %arg5[%c0_10, %c0_11, %c0_12] : memref<1x1x128xf32, #tpu.memory_space<vmem>>, vector<1x1x128xf32>
    %cst_13 = arith.constant dense<0.000000e+00> : vector<128xf32>
    %12 = vector.multi_reduction <add>, %10, %cst_13 [0] : vector<256x128xf32> to vector<128xf32>
    %13 = vector.shape_cast %12 : vector<128xf32> to vector<1x1x128xf32>
    %14 = arith.addf %11, %13 : vector<1x1x128xf32>
    %c0_14 = arith.constant 0 : index
    %c0_15 = arith.constant 0 : index
    %c0_16 = arith.constant 0 : index
    %15 = vector.load %arg5[%c0_14, %c0_15, %c0_16] : memref<1x1x128xf32, #tpu.memory_space<vmem>>, vector<1x1x128xf32>
    tpu.vector_store %arg5[%c0_14, %c0_15, %c0_16], %14 {strides = array<i32>} : memref<1x1x128xf32, #tpu.memory_space<vmem>>, vector<1x1x128xf32>,
    %c0_17 = arith.constant 0 : index
    %c0_18 = arith.constant 0 : index
    %c0_19 = arith.constant 0 : index
    %16 = vector.load %arg6[%c0_17, %c0_18, %c0_19] : memref<1x1x128xf32, #tpu.memory_space<vmem>>, vector<1x1x128xf32>
    %17 = arith.mulf %10, %10 : vector<256x128xf32>
    %cst_20 = arith.constant dense<0.000000e+00> : vector<128xf32>
    %18 = vector.multi_reduction <add>, %17, %cst_20 [0] : vector<256x128xf32> to vector<128xf32>
    %19 = vector.shape_cast %18 : vector<128xf32> to vector<1x1x128xf32>
    %20 = arith.addf %16, %19 : vector<1x1x128xf32>
    %c0_21 = arith.constant 0 : index
    %c0_22 = arith.constant 0 : index
    %c0_23 = arith.constant 0 : index
    %21 = vector.load %arg6[%c0_21, %c0_22, %c0_23] : memref<1x1x128xf32, #tpu.memory_space<vmem>>, vector<1x1x128xf32>
    tpu.vector_store %arg6[%c0_21, %c0_22, %c0_23], %20 {strides = array<i32>} : memref<1x1x128xf32, #tpu.memory_space<vmem>>, vector<1x1x128xf32>,
    return
  }
  func.func @transform_0(%arg0: i32, %arg1: i32) -> (i32, i32, i32, i32) {
    %c0_i32 = arith.constant 0 : i32
    %c0_i32_0 = arith.constant 0 : i32
    %c0_i32_1 = arith.constant 0 : i32
    return %arg0, %arg1, %c0_i32, %c0_i32_0 : i32, i32, i32, i32
  }
  func.func @transform_1(%arg0: i32, %arg1: i32) -> (i32, i32) {
    %c0_i32 = arith.constant 0 : i32
    %c0_i32_0 = arith.constant 0 : i32
    %c0_i32_1 = arith.constant 0 : i32
    return %c0_i32, %c0_i32_0 : i32, i32
  }
  func.func @transform_2(%arg0: i32, %arg1: i32) -> (i32, i32, i32, i32) {
    %c0_i32 = arith.constant 0 : i32
    %c0_i32_0 = arith.constant 0 : i32
    %c0_i32_1 = arith.constant 0 : i32
    return %arg0, %arg1, %c0_i32, %c0_i32_0 : i32, i32, i32, i32
  }
  func.func @transform_3(%arg0: i32, %arg1: i32) -> (i32, i32, i32) {
    %c0_i32 = arith.constant 0 : i32
    %c0_i32_0 = arith.constant 0 : i32
    %c0_i32_1 = arith.constant 0 : i32
    return %arg0, %c0_i32, %c0_i32_0 : i32, i32, i32
  }
  func.func @transform_4(%arg0: i32, %arg1: i32) -> (i32, i32, i32) {
    %c0_i32 = arith.constant 0 : i32
    %c0_i32_0 = arith.constant 0 : i32
    %c0_i32_1 = arith.constant 0 : i32
    return %arg0, %c0_i32, %c0_i32_0 : i32, i32, i32
  }
}

module attributes {stable_mosaic.version = 11 : i64} {
  func.func @bn_relu_kernel(%arg0: i32, %arg1: i32, %arg2: memref<1x16x16x128xf32, #tpu.memory_space<vmem>>, %arg3: memref<1x128xf32, #tpu.memory_space<vmem>>, %arg4: memref<1x128xf32, #tpu.memory_space<vmem>>, %arg5: memref<1x16x16x128xf32, #tpu.memory_space<vmem>>) attributes {dimension_semantics = [#tpu.dimension_semantics<parallel>, #tpu.dimension_semantics<parallel>], iteration_bounds = array<i64: 2, 1>, scalar_prefetch = 0 : i64, scratch_operands = 0 : i64, tpu.core_type = #tpu.core_type<tc>, window_params = [{transform_indices = @transform_0, window_bounds = array<i64: 1, 16, 16, 128>}, {pipeline_mode = #tpu.pipeline_mode<synchronous>, transform_indices = @transform_1, window_bounds = array<i64: 1, 128>}, {pipeline_mode = #tpu.pipeline_mode<synchronous>, transform_indices = @transform_2, window_bounds = array<i64: 1, 128>}, {transform_indices = @transform_3, window_bounds = array<i64: 1, 16, 16, 128>}]} {
    %c0 = arith.constant 0 : index
    %c0_0 = arith.constant 0 : index
    %c0_1 = arith.constant 0 : index
    %c0_2 = arith.constant 0 : index
    %0 = vector.load %arg2[%c0, %c0_0, %c0_1, %c0_2] : memref<1x16x16x128xf32, #tpu.memory_space<vmem>>, vector<1x16x16x128xf32>
    %1 = vector.shape_cast %0 : vector<1x16x16x128xf32> to vector<16x16x128xf32>
    %c0_3 = arith.constant 0 : index
    %c0_4 = arith.constant 0 : index
    %2 = vector.load %arg3[%c0_3, %c0_4] : memref<1x128xf32, #tpu.memory_space<vmem>>, vector<1x128xf32>
    %3 = vector.shape_cast %2 : vector<1x128xf32> to vector<128xf32>
    %4 = vector.shape_cast %3 : vector<128xf32> to vector<1x1x128xf32>
    %5 = vector.broadcast %4 : vector<1x1x128xf32> to vector<16x16x128xf32>
    %6 = arith.mulf %1, %5 : vector<16x16x128xf32>
    %c0_5 = arith.constant 0 : index
    %c0_6 = arith.constant 0 : index
    %7 = vector.load %arg4[%c0_5, %c0_6] : memref<1x128xf32, #tpu.memory_space<vmem>>, vector<1x128xf32>
    %8 = vector.shape_cast %7 : vector<1x128xf32> to vector<128xf32>
    %9 = vector.shape_cast %8 : vector<128xf32> to vector<1x1x128xf32>
    %10 = vector.broadcast %9 : vector<1x1x128xf32> to vector<16x16x128xf32>
    %11 = arith.addf %6, %10 : vector<16x16x128xf32>
    %cst = arith.constant 0.000000e+00 : f32
    %12 = vector.broadcast %cst : f32 to vector<16x16x128xf32>
    %13 = arith.maximumf %11, %12 : vector<16x16x128xf32>
    %c0_7 = arith.constant 0 : index
    %c0_8 = arith.constant 0 : index
    %c0_9 = arith.constant 0 : index
    %c0_10 = arith.constant 0 : index
    %14 = vector.load %arg5[%c0_7, %c0_8, %c0_9, %c0_10] : memref<1x16x16x128xf32, #tpu.memory_space<vmem>>, vector<1x16x16x128xf32>
    %15 = vector.shape_cast %14 : vector<1x16x16x128xf32> to vector<16x16x128xf32>
    %16 = vector.shape_cast %13 : vector<16x16x128xf32> to vector<1x16x16x128xf32>
    tpu.vector_store %arg5[%c0_7, %c0_8, %c0_9, %c0_10], %16 {strides = array<i32>} : memref<1x16x16x128xf32, #tpu.memory_space<vmem>>, vector<1x16x16x128xf32>,
    return
  }
  func.func @transform_0(%arg0: i32, %arg1: i32) -> (i32, i32, i32, i32) {
    %c0_i32 = arith.constant 0 : i32
    %c0_i32_0 = arith.constant 0 : i32
    %c0_i32_1 = arith.constant 0 : i32
    return %arg0, %arg1, %c0_i32, %c0_i32_0 : i32, i32, i32, i32
  }
  func.func @transform_1(%arg0: i32, %arg1: i32) -> (i32, i32) {
    %c0_i32 = arith.constant 0 : i32
    %c0_i32_0 = arith.constant 0 : i32
    %c0_i32_1 = arith.constant 0 : i32
    return %c0_i32, %c0_i32_0 : i32, i32
  }
  func.func @transform_2(%arg0: i32, %arg1: i32) -> (i32, i32) {
    %c0_i32 = arith.constant 0 : i32
    %c0_i32_0 = arith.constant 0 : i32
    %c0_i32_1 = arith.constant 0 : i32
    return %c0_i32, %c0_i32_0 : i32, i32
  }
  func.func @transform_3(%arg0: i32, %arg1: i32) -> (i32, i32, i32, i32) {
    %c0_i32 = arith.constant 0 : i32
    %c0_i32_0 = arith.constant 0 : i32
    %c0_i32_1 = arith.constant 0 : i32
    return %arg0, %arg1, %c0_i32, %c0_i32_0 : i32, i32, i32, i32
  }
}

</mosaic_0001>

<llo_original>
// kernel: tile.13
$region0: #{tile.13}
  #allocation0 [shape = 's32[1]{0}', space=sflag, size = 0x4, scoped, tag = 'scoped memory for tile.13']
  %s0 = inlined_call_operand.vmem [shape: f32[32], index: 0, kind: input, shape index: {}]
  %s1 = inlined_call_operand.vmem [shape: f32[4,32], index: 1, kind: output, shape index: {}]
  // Predicated region
  $region2: #{tile.13} parent=0 // pred_check
    _
  $region3: #{tile.13} parent=0 // pred_check_branch
    %3 = sbr.rel (0) target = $region5
  $region4: #{tile.13} parent=0 // pred_region
    _
  $region5: #{tile.13} parent=0 // pred_fallthru
    _
  %v4 = vld [vmem:[%s0] ss:$0 sm:$0xff]
  %5 = vst [vmem:[%s1] sm:$0xf] %v4

// kernel: tile.14
$region0: #{tile.14}
  %s0 = inlined_call_operand.vmem [shape: f32[4,32], index: 0, kind: input, shape index: {}]
  %s1 = inlined_call_operand.vmem [shape: f32[1,128], index: 1, kind: output, shape index: {}]
  $region1: #{tile.14} parent=0
    #allocation0 [shape = 'u8[4096]{0}', space=vmem, size = 0x1000, scoped, tag = 'scoped mem for output reshape']
    #allocation1 [shape = 'u8[4096]{0}', space=vmem, size = 0x1000, scoped, tag = 'scoped mem for input reshape']
    %s3 = sshll.u32 1, 4
    %s4 = ssub.s32 %s3, 1
    %v5 = vld [vmem:[%s0] sm:%s4]
    %6 = vst [vmem:[#allocation1] sm:%s4] %v5
    %v7 = vld [vmem:[#allocation1] sm:$0x1]
    %vm8 = vcmask 261120
    %9 = vst.msk [vmem:[#allocation0] sm:$0x1] %vm8, %v7
    %s10 = scalar_lea.vmem [#allocation1], 3
    %v11 = vld [vmem:[%s10] sm:$0x1]
    %12 = vrot.lane.b32.xlu0 %v11, 96
    %v13 = vpop.permute.xlu0 %12
    %vm14 = vcmask 1048320
    %15 = vst.msk [vmem:[#allocation0] sm:$0x1] %vm14, %v13
    %s16 = scalar_lea.vmem [#allocation1], 2
    %v17 = vld [vmem:[%s16] sm:$0x1]
    %18 = vrot.lane.b32.xlu0 %v17, 64
    %v19 = vpop.permute.xlu0 %18
    %vm20 = vcmask 785920
    %21 = vst.msk [vmem:[#allocation0] sm:$0x1] %vm20, %v19
    %s22 = scalar_lea.vmem [#allocation1], 1
    %v23 = vld [vmem:[%s22] sm:$0x1]
    %24 = vrot.lane.b32.xlu0 %v23, 32
    %v25 = vpop.permute.xlu0 %24
    %vm26 = vcmask 523520
    %27 = vst.msk [vmem:[#allocation0] sm:$0x1] %vm26, %v25
    %s29 = sshll.u32 1, 1
    %s30 = ssub.s32 %s29, 1
    %v32 = vld [vmem:[#allocation0] sm:%s30]
    %s33 = sshll.u32 1, 1
    %s34 = ssub.s32 %s33, 1
    %35 = vst [vmem:[%s1] sm:%s34] %v32

// kernel: unet_up_conv.3
$region0: #{unet_up_conv.3}
  #allocation0 [shape = 'u32[]', space=smem, size = 0x4, offset = 0x4, fixed_abs, tag = 'smem constant byte address 0x4 - core index']
  #allocation1 [shape = 'u32[144,128]{1,0:T(1,128)}', space=vmem, size = 0x12000, scoped, tag = 'internal scratch']
  %s0 = inlined_call_operand.vmem [shape: f32[2,16,16,128], index: 0, kind: input, shape index: {}]
  %s1 = inlined_call_operand.vmem [shape: f32[1,128], index: 1, kind: input, shape index: {}]
  %s2 = inlined_call_operand.vmem [shape: f32[1,128], index: 2, kind: input, shape index: {}]
  %s3 = inlined_call_operand.vmem [shape: f32[2,16,16,128], index: 3, kind: output, shape index: {}]
  %s4 = sld [smem:[#allocation0]]
  $region45: #{unet_up_conv.3} parent=0
    _
  %s6 = ssub.s32 1, %s4
  %s7 = scalar_select 0, %s6, %s4
  loop: start=0, step=1, limit=4
  $region2: #{unet_up_conv.3} parent=0 // loop_pre_header
    _
  $region3: #{unet_up_conv.3} parent=0 // loop_header
    %s9 = sphi 0, %s13
    %p10 = scmp.ge.s32.totalorder %s9, 4
    %s16 = sphi 0, %s28
    %s17 = sphi 0, %s24
    %s18 = sphi 0, %s16
    %s19 = sphi 0, %s17
    %s20 = sphi 0, %s18
    %s21 = sphi 0, %s19
    %s33 = sphi 0, %s35
    %s36 = sphi 0, %s33
    %s37 = sphi 0, %s36
    %s53 = sphi 0, %s37
    %s57 = sphi 0, %s57
    %s59 = sphi 0, %s57
    %s60 = sphi 0, %s59
    %s74 = sphi 0, %s60
    %s78 = sphi 0, %s78
    %s80 = sphi 0, %s78
    %s81 = sphi 0, %s80
    %s95 = sphi 0, %s81
    %s103 = sphi 0, %s105
    %s106 = sphi 0, %s103
    %s107 = sphi 0, %s106
    %s123 = sphi 0, %s107
  $region4: #{unet_up_conv.3} parent=0 // loop_header_branch
    %12 = sbr.rel (%p10) target = $region8
  $region5: #{unet_up_conv.3} parent=0 // loop_body
    %s14 = ssub.s32 %s9, 1
    %s15 = ssub.s32 %s9, 2
    %s22 = sadd.s32 1, %s17
    %p23 = scmp.ge.s32.totalorder %s22, 1
    %s24 = scalar_select %p23, 0, %s22
    %s25 = sadd.s32 1, %s16
    %s26 = scalar_select %p23, %s25, %s16
    %p27 = scmp.ge.s32.totalorder %s26, 2
    %s28 = scalar_select %p27, 0, %s26
    %s29 = ssub.s32 %s16, %s28
    %s30 = ssub.s32 %s17, %s24
    %s31 = sor.u32 %s29, %s30
    %p32 = scmp.eq.s32.totalorder %s31, 0
    %s34 = sadd.s32 %s33, 1
    %s35 = scalar_select %p32, %s33, %s34
    %p38 = pneg %p32
    %p39 = scmp.eq.s32.totalorder %s9, 1
    %p40 = por %p38, %p39
    %p41 = scmp.ne.s32.totalorder %s33, %s36
    %p42 = scmp.eq.s32.totalorder %s9, 0
    %p43 = por %p41, %p42
    %p44 = scmp.ne.s32.totalorder %s33, %s36
    %p45 = scmp.eq.s32.totalorder %s14, 1
    %p46 = por %p44, %p45
    %p47 = scmp.ne.s32.totalorder %s36, %s37
    %p48 = scmp.eq.s32.totalorder %s14, 0
    %p49 = por %p47, %p48
    %p50 = scmp.ne.s32.totalorder %s36, %s37
    %p51 = scmp.eq.s32.totalorder %s15, 1
    %p52 = por %p50, %p51
    %p54 = scmp.ne.s32.totalorder %s37, %s53
    %p55 = scmp.eq.s32.totalorder %s15, 0
    %p56 = por %p54, %p55
    %s58 = sadd.s32 %s57, 1
    %p61 = scmp.eq.s32.totalorder %s9, 1
    %p62 = scmp.ne.s32.totalorder %s57, %s59
    %p63 = scmp.eq.s32.totalorder %s9, 0
    %p64 = por %p62, %p63
    %p65 = scmp.ne.s32.totalorder %s57, %s59
    %p66 = scmp.eq.s32.totalorder %s14, 1
    %p67 = por %p65, %p66
    %p68 = scmp.ne.s32.totalorder %s59, %s60
    %p69 = scmp.eq.s32.totalorder %s14, 0
    %p70 = por %p68, %p69
    %p71 = scmp.ne.s32.totalorder %s59, %s60
    %p72 = scmp.eq.s32.totalorder %s15, 1
    %p73 = por %p71, %p72
    %p75 = scmp.ne.s32.totalorder %s60, %s74
    %p76 = scmp.eq.s32.totalorder %s15, 0
    %p77 = por %p75, %p76
    %s79 = sadd.s32 %s78, 1
    %p82 = scmp.eq.s32.totalorder %s9, 1
    %p83 = scmp.ne.s32.totalorder %s78, %s80
    %p84 = scmp.eq.s32.totalorder %s9, 0
    %p85 = por %p83, %p84
    %p86 = scmp.ne.s32.totalorder %s78, %s80
    %p87 = scmp.eq.s32.totalorder %s14, 1
    %p88 = por %p86, %p87
    %p89 = scmp.ne.s32.totalorder %s80, %s81
    %p90 = scmp.eq.s32.totalorder %s14, 0
    %p91 = por %p89, %p90
    %p92 = scmp.ne.s32.totalorder %s80, %s81
    %p93 = scmp.eq.s32.totalorder %s15, 1
    %p94 = por %p92, %p93
    %p96 = scmp.ne.s32.totalorder %s81, %s95
    %p97 = scmp.eq.s32.totalorder %s15, 0
    %p98 = por %p96, %p97
    %s99 = ssub.s32 %s16, %s28
    %s100 = ssub.s32 %s17, %s24
    %s101 = sor.u32 %s99, %s100
    %p102 = scmp.eq.s32.totalorder %s101, 0
    %s104 = sadd.s32 %s103, 1
    %s105 = scalar_select %p102, %s103, %s104
    %p108 = pneg %p102
    %p109 = scmp.eq.s32.totalorder %s9, 1
    %p110 = por %p108, %p109
    %p111 = scmp.ne.s32.totalorder %s103, %s106
    %p112 = scmp.eq.s32.totalorder %s9, 0
    %p113 = por %p111, %p112
    %p114 = scmp.ne.s32.totalorder %s103, %s106
    %p115 = scmp.eq.s32.totalorder %s14, 1
    %p116 = por %p114, %p115
    %p117 = scmp.ne.s32.totalorder %s106, %s107
    %p118 = scmp.eq.s32.totalorder %s14, 0
    %p119 = por %p117, %p118
    %p120 = scmp.ne.s32.totalorder %s106, %s107
    %p121 = scmp.eq.s32.totalorder %s15, 1
    %p122 = por %p120, %p121
    %p124 = scmp.ne.s32.totalorder %s107, %s123
    %p125 = scmp.eq.s32.totalorder %s15, 0
    %p126 = por %p124, %p125
    %p127 = scmp.le.s32.totalorder 1, %s9
    %p128 = scmp.lt.s32.totalorder %s9, 3
    %p129 = pnand %p127, %p128
    %p130 = pneg %p129
    // Predicated region
    $region9: #{unet_up_conv.3} parent=5 // pred_check
      _
    $region10: #{unet_up_conv.3} parent=5 // pred_check_branch
      %132 = sbr.rel (%p129) target = $region12
    $region11: #{unet_up_conv.3} parent=5 // pred_region
      %s133 = ssub.s32 %s9, 1
      // Predicated region
      $region13: #{unet_up_conv.3} parent=11 // pred_check
        %p134 = pneg %p70
      $region14: #{unet_up_conv.3} parent=11 // pred_check_branch
        %136 = sbr.rel (%p134) target = $region16
      $region15: #{unet_up_conv.3} parent=11 // pred_region
        _
      $region16: #{unet_up_conv.3} parent=11 // pred_fallthru
        _
      // Predicated region
      $region17: #{unet_up_conv.3} parent=11 // pred_check
        %p137 = pneg %p91
      $region18: #{unet_up_conv.3} parent=11 // pred_check_branch
        %139 = sbr.rel (%p137) target = $region20
      $region19: #{unet_up_conv.3} parent=11 // pred_region
        _
      $region20: #{unet_up_conv.3} parent=11 // pred_fallthru
        _
    $region12: #{unet_up_conv.3} parent=5 // pred_fallthru
      _
    %p140 = scmp.lt.s32.totalorder %s9, 2
    // Predicated region
    $region21: #{unet_up_conv.3} parent=5 // pred_check
      %p141 = pneg %p140
    $region22: #{unet_up_conv.3} parent=5 // pred_check_branch
      %143 = sbr.rel (%p141) target = $region24
    $region23: #{unet_up_conv.3} parent=5 // pred_region
      // Predicated region
      $region25: #{unet_up_conv.3} parent=23 // pred_check
        %p144 = pneg %p43
      $region26: #{unet_up_conv.3} parent=23 // pred_check_branch
        %146 = sbr.rel (%p144) target = $region28
      $region27: #{unet_up_conv.3} parent=23 // pred_region
        %s147 = smul.u32 16, %s17
        %p148 = scmp.lt.s32.totalorder %s16, 1
        %s149 = scalar_select %p148, %s16, 1
        %p150 = scmp.lt.s32.totalorder %s147, 15
        %s151 = scalar_select %p150, %s147, 15
        %s152 = smul.addr %s151, 2
        %s153 = smul.addr %s149, 32
        %s154 = sadd.s32 %s152, %s153
        %s155 = smul.addr %s154, 8
        %s156 = scalar_lea.vmem %s0, %s155
        %s157 = smul.u32 16, %s17
      $region28: #{unet_up_conv.3} parent=23 // pred_fallthru
        _
    $region24: #{unet_up_conv.3} parent=5 // pred_fallthru
      _
    %p158 = scmp.le.s32.totalorder 1, %s9
    %p159 = scmp.lt.s32.totalorder %s9, 3
    %p160 = pnand %p158, %p159
    %p161 = pneg %p160
    // Predicated region
    $region29: #{unet_up_conv.3} parent=5 // pred_check
      _
    $region30: #{unet_up_conv.3} parent=5 // pred_check_branch
      %163 = sbr.rel (%p160) target = $region32
    $region31: #{unet_up_conv.3} parent=5 // pred_region
      %s164 = ssub.s32 %s9, 1
      %s165 = smul.u32 16, %s19
      %p166 = scmp.lt.s32.totalorder %s18, 1
      %s167 = scalar_select %p166, %s18, 1
      %p168 = scmp.lt.s32.totalorder %s165, 15
      %s169 = scalar_select %p168, %s165, 15
      %s170 = smul.addr %s169, 2
      %s171 = smul.addr %s167, 32
      %s172 = sadd.s32 %s170, %s171
      %s173 = smul.addr %s172, 8
      %s174 = scalar_lea.vmem %s0, %s173
      %p175 = pneg %p49
      %p176 = pneg %p46
      %p177 = pneg %p70
      %p178 = pneg %p67
      %p179 = pneg %p91
      %p180 = pneg %p88
      %p181 = pneg %p119
      %p182 = pneg %p116
      %s183 = smul.u32 16, %s19
      %p184 = scmp.lt.s32.totalorder %s18, 1
      %s185 = scalar_select %p184, %s18, 1
      %p186 = scmp.lt.s32.totalorder %s183, 15
      %s187 = scalar_select %p186, %s183, 15
      %s188 = smul.addr %s187, 2
      %s189 = smul.addr %s185, 32
      %s190 = sadd.s32 %s188, %s189
      %s191 = smul.addr %s190, 8
      %s192 = scalar_lea.vmem %s3, %s191
      %s193 = smul.u32 16, %s19
      %p194 = scmp.lt.s32.totalorder %s18, 1
      %s195 = scalar_select %p194, %s18, 1
      %p196 = scmp.lt.s32.totalorder %s193, 15
      %s197 = scalar_select %p196, %s193, 15
      %s198 = smul.addr %s197, 2
      %s199 = smul.addr %s195, 32
      %s200 = sadd.s32 %s198, %s199
      %s201 = smul.addr %s200, 8
      %s202 = scalar_lea.vmem %s0, %s201
      %s203 = smul.u32 16, %s19
      %s204 = smul.u32 16, %s19
      %p205 = scmp.lt.s32.totalorder %s18, 1
      %s206 = scalar_select %p205, %s18, 1
      %p207 = scmp.lt.s32.totalorder %s204, 15
      %s208 = scalar_select %p207, %s204, 15
      %s209 = smul.addr %s208, 2
      %s210 = smul.addr %s206, 32
      %s211 = sadd.s32 %s209, %s210
      %s212 = smul.addr %s211, 8
      %s213 = scalar_lea.vmem %s3, %s212
      %s214 = smul.u32 16, %s19
      %v215 = vld [vmem:[%s202] sm:$0xff]
      %v216 = vld [vmem:[%s202 + $0x8] sm:$0xff]
      %v217 = vld [vmem:[%s202 + $0x10] sm:$0xff]
      %v218 = vld [vmem:[%s202 + $0x18] sm:$0xff]
      %v219 = vld [vmem:[%s202 + $0x20] sm:$0xff]
      %v220 = vld [vmem:[%s202 + $0x28] sm:$0xff]
      %v221 = vld [vmem:[%s202 + $0x30] sm:$0xff]
      %v222 = vld [vmem:[%s202 + $0x38] sm:$0xff]
      %v223 = vld [vmem:[%s202 + $0x40] sm:$0xff]
      %v224 = vld [vmem:[%s202 + $0x48] sm:$0xff]
      %v225 = vld [vmem:[%s202 + $0x50] sm:$0xff]
      %v226 = vld [vmem:[%s202 + $0x58] sm:$0xff]
      %v227 = vld [vmem:[%s202 + $0x60] sm:$0xff]
      %v228 = vld [vmem:[%s202 + $0x68] sm:$0xff]
      %v229 = vld [vmem:[%s202 + $0x70] sm:$0xff]
      %v230 = vld [vmem:[%s202 + $0x78] sm:$0xff]
      %v231 = vld [vmem:[%s202 + $0x80] sm:$0xff]
      %v232 = vld [vmem:[%s202 + $0x88] sm:$0xff]
      %v233 = vld [vmem:[%s202 + $0x90] sm:$0xff]
      %v234 = vld [vmem:[%s202 + $0x98] sm:$0xff]
      %v235 = vld [vmem:[%s202 + $0xa0] sm:$0xff]
      %v236 = vld [vmem:[%s202 + $0xa8] sm:$0xff]
      %v237 = vld [vmem:[%s202 + $0xb0] sm:$0xff]
      %v238 = vld [vmem:[%s202 + $0xb8] sm:$0xff]
      %v239 = vld [vmem:[%s202 + $0xc0] sm:$0xff]
      %v240 = vld [vmem:[%s202 + $0xc8] sm:$0xff]
      %v241 = vld [vmem:[%s202 + $0xd0] sm:$0xff]
      %v242 = vld [vmem:[%s202 + $0xd8] sm:$0xff]
      %v243 = vld [vmem:[%s202 + $0xe0] sm:$0xff]
      %v244 = vld [vmem:[%s202 + $0xe8] sm:$0xff]
      %v245 = vld [vmem:[%s202 + $0xf0] sm:$0xff]
      %v246 = vld [vmem:[%s202 + $0xf8] sm:$0xff]
      %v247 = vld [vmem:[%s1] sm:$0x1]
      %v249 = vlaneseq
      %v250 = vshrl.u32 %v249, 7
      %v251 = vsub.s32 0, %v250
      %v252 = vrot.slane %v247, %v251
      %v254 = vmul.f32 %v215, %v252
      %v255 = vmul.f32 %v216, %v252
      %v256 = vmul.f32 %v217, %v252
      %v257 = vmul.f32 %v218, %v252
      %v258 = vmul.f32 %v219, %v252
      %v259 = vmul.f32 %v220, %v252
      %v260 = vmul.f32 %v221, %v252
      %v261 = vmul.f32 %v222, %v252
      %v262 = vmul.f32 %v223, %v252
      %v263 = vmul.f32 %v224, %v252
      %v264 = vmul.f32 %v225, %v252
      %v265 = vmul.f32 %v226, %v252
      %v266 = vmul.f32 %v227, %v252
      %v267 = vmul.f32 %v228, %v252
      %v268 = vmul.f32 %v229, %v252
      %v269 = vmul.f32 %v230, %v252
      %v270 = vmul.f32 %v231, %v252
      %v271 = vmul.f32 %v232, %v252
      %v272 = vmul.f32 %v233, %v252
      %v273 = vmul.f32 %v234, %v252
      %v274 = vmul.f32 %v235, %v252
      %v275 = vmul.f32 %v236, %v252
      %v276 = vmul.f32 %v237, %v252
      %v277 = vmul.f32 %v238, %v252
      %v278 = vmul.f32 %v239, %v252
      %v279 = vmul.f32 %v240, %v252
      %v280 = vmul.f32 %v241, %v252
      %v281 = vmul.f32 %v242, %v252
      %v282 = vmul.f32 %v243, %v252
      %v283 = vmul.f32 %v244, %v252
      %v284 = vmul.f32 %v245, %v252
      %v285 = vmul.f32 %v246, %v252
      %v286 = vld [vmem:[%s2] sm:$0x1]
      %v288 = vlaneseq
      %v289 = vshrl.u32 %v288, 7
      %v290 = vsub.s32 0, %v289
      %v291 = vrot.slane %v286, %v290
      %v293 = vadd.f32 %v254, %v291
      %v294 = vadd.f32 %v255, %v291
      %v295 = vadd.f32 %v256, %v291
      %v296 = vadd.f32 %v257, %v291
      %v297 = vadd.f32 %v258, %v291
      %v298 = vadd.f32 %v259, %v291
      %v299 = vadd.f32 %v260, %v291
      %v300 = vadd.f32 %v261, %v291
      %v301 = vadd.f32 %v262, %v291
      %v302 = vadd.f32 %v263, %v291
      %v303 = vadd.f32 %v264, %v291
      %v304 = vadd.f32 %v265, %v291
      %v305 = vadd.f32 %v266, %v291
      %v306 = vadd.f32 %v267, %v291
      %v307 = vadd.f32 %v268, %v291
      %v308 = vadd.f32 %v269, %v291
      %v309 = vadd.f32 %v270, %v291
      %v310 = vadd.f32 %v271, %v291
      %v311 = vadd.f32 %v272, %v291
      %v312 = vadd.f32 %v273, %v291
      %v313 = vadd.f32 %v274, %v291
      %v314 = vadd.f32 %v275, %v291
      %v315 = vadd.f32 %v276, %v291
      %v316 = vadd.f32 %v277, %v291
      %v317 = vadd.f32 %v278, %v291
      %v318 = vadd.f32 %v279, %v291
      %v319 = vadd.f32 %v280, %v291
      %v320 = vadd.f32 %v281, %v291
      %v321 = vadd.f32 %v282, %v291
      %v322 = vadd.f32 %v283, %v291
      %v323 = vadd.f32 %v284, %v291
      %v324 = vadd.f32 %v285, %v291
      %v325 = vmax.f32 %v293, 0.0
      %v326 = vmax.f32 %v294, 0.0
      %v327 = vmax.f32 %v295, 0.0
      %v328 = vmax.f32 %v296, 0.0
      %v329 = vmax.f32 %v297, 0.0
      %v330 = vmax.f32 %v298, 0.0
      %v331 = vmax.f32 %v299, 0.0
      %v332 = vmax.f32 %v300, 0.0
      %v333 = vmax.f32 %v301, 0.0
      %v334 = vmax.f32 %v302, 0.0
      %v335 = vmax.f32 %v303, 0.0
      %v336 = vmax.f32 %v304, 0.0
      %v337 = vmax.f32 %v305, 0.0
      %v338 = vmax.f32 %v306, 0.0
      %v339 = vmax.f32 %v307, 0.0
      %v340 = vmax.f32 %v308, 0.0
      %v341 = vmax.f32 %v309, 0.0
      %v342 = vmax.f32 %v310, 0.0
      %v343 = vmax.f32 %v311, 0.0
      %v344 = vmax.f32 %v312, 0.0
      %v345 = vmax.f32 %v313, 0.0
      %v346 = vmax.f32 %v314, 0.0
      %v347 = vmax.f32 %v315, 0.0
      %v348 = vmax.f32 %v316, 0.0
      %v349 = vmax.f32 %v317, 0.0
      %v350 = vmax.f32 %v318, 0.0
      %v351 = vmax.f32 %v319, 0.0
      %v352 = vmax.f32 %v320, 0.0
      %v353 = vmax.f32 %v321, 0.0
      %v354 = vmax.f32 %v322, 0.0
      %v355 = vmax.f32 %v323, 0.0
      %v356 = vmax.f32 %v324, 0.0
      %357 = vst [vmem:[%s213] sm:$0xff] %v325
      %358 = vst [vmem:[%s213 + $0x8] sm:$0xff] %v326
      %359 = vst [vmem:[%s213 + $0x10] sm:$0xff] %v327
      %360 = vst [vmem:[%s213 + $0x18] sm:$0xff] %v328
      %361 = vst [vmem:[%s213 + $0x20] sm:$0xff] %v329
      %362 = vst [vmem:[%s213 + $0x28] sm:$0xff] %v330
      %363 = vst [vmem:[%s213 + $0x30] sm:$0xff] %v331
      %364 = vst [vmem:[%s213 + $0x38] sm:$0xff] %v332
      %365 = vst [vmem:[%s213 + $0x40] sm:$0xff] %v333
      %366 = vst [vmem:[%s213 + $0x48] sm:$0xff] %v334
      %367 = vst [vmem:[%s213 + $0x50] sm:$0xff] %v335
      %368 = vst [vmem:[%s213 + $0x58] sm:$0xff] %v336
      %369 = vst [vmem:[%s213 + $0x60] sm:$0xff] %v337
      %370 = vst [vmem:[%s213 + $0x68] sm:$0xff] %v338
      %371 = vst [vmem:[%s213 + $0x70] sm:$0xff] %v339
      %372 = vst [vmem:[%s213 + $0x78] sm:$0xff] %v340
      %373 = vst [vmem:[%s213 + $0x80] sm:$0xff] %v341
      %374 = vst [vmem:[%s213 + $0x88] sm:$0xff] %v342
      %375 = vst [vmem:[%s213 + $0x90] sm:$0xff] %v343
      %376 = vst [vmem:[%s213 + $0x98] sm:$0xff] %v344
      %377 = vst [vmem:[%s213 + $0xa0] sm:$0xff] %v345
      %378 = vst [vmem:[%s213 + $0xa8] sm:$0xff] %v346
      %379 = vst [vmem:[%s213 + $0xb0] sm:$0xff] %v347
      %380 = vst [vmem:[%s213 + $0xb8] sm:$0xff] %v348
      %381 = vst [vmem:[%s213 + $0xc0] sm:$0xff] %v349
      %382 = vst [vmem:[%s213 + $0xc8] sm:$0xff] %v350
      %383 = vst [vmem:[%s213 + $0xd0] sm:$0xff] %v351
      %384 = vst [vmem:[%s213 + $0xd8] sm:$0xff] %v352
      %385 = vst [vmem:[%s213 + $0xe0] sm:$0xff] %v353
      %386 = vst [vmem:[%s213 + $0xe8] sm:$0xff] %v354
      %387 = vst [vmem:[%s213 + $0xf0] sm:$0xff] %v355
      %388 = vst [vmem:[%s213 + $0xf8] sm:$0xff] %v356
      %s389 = smul.u32 16, %s19
      %p390 = scmp.lt.s32.totalorder %s18, 1
      %s391 = scalar_select %p390, %s18, 1
      %p392 = scmp.lt.s32.totalorder %s389, 15
      %s393 = scalar_select %p392, %s389, 15
      %s394 = smul.addr %s393, 2
      %s395 = smul.addr %s391, 32
      %s396 = sadd.s32 %s394, %s395
      %s397 = smul.addr %s396, 8
      %s398 = scalar_lea.vmem %s3, %s397
      // Predicated region
      $region33: #{unet_up_conv.3} parent=31 // pred_check
        %p399 = pneg %p116
      $region34: #{unet_up_conv.3} parent=31 // pred_check_branch
        %401 = sbr.rel (%p399) target = $region36
      $region35: #{unet_up_conv.3} parent=31 // pred_region
        %s402 = smul.u32 16, %s19
      $region36: #{unet_up_conv.3} parent=31 // pred_fallthru
        _
    $region32: #{unet_up_conv.3} parent=5 // pred_fallthru
      _
    %p403 = scmp.le.s32.totalorder 2, %s9
    // Predicated region
    $region37: #{unet_up_conv.3} parent=5 // pred_check
      %p404 = pneg %p403
    $region38: #{unet_up_conv.3} parent=5 // pred_check_branch
      %406 = sbr.rel (%p404) target = $region40
    $region39: #{unet_up_conv.3} parent=5 // pred_region
      %s407 = ssub.s32 %s9, 2
      // Predicated region
      $region41: #{unet_up_conv.3} parent=39 // pred_check
        %p408 = pneg %p122
      $region42: #{unet_up_conv.3} parent=39 // pred_check_branch
        %410 = sbr.rel (%p408) target = $region44
      $region43: #{unet_up_conv.3} parent=39 // pred_region
        %s411 = smul.u32 16, %s21
        %p412 = scmp.lt.s32.totalorder %s20, 1
        %s413 = scalar_select %p412, %s20, 1
        %p414 = scmp.lt.s32.totalorder %s411, 15
        %s415 = scalar_select %p414, %s411, 15
        %s416 = smul.addr %s415, 2
        %s417 = smul.addr %s413, 32
        %s418 = sadd.s32 %s416, %s417
        %s419 = smul.addr %s418, 8
        %s420 = scalar_lea.vmem %s3, %s419
      $region44: #{unet_up_conv.3} parent=39 // pred_fallthru
        _
    $region40: #{unet_up_conv.3} parent=5 // pred_fallthru
      _
  $region6: #{unet_up_conv.3} parent=0 // loop_footer
    %s13 = sadd.s32 1, %s9
  $region7: #{unet_up_conv.3} parent=0 // loop_footer_branch
    %8 = sbr.rel target = $region3
  $region8: #{unet_up_conv.3} parent=0 // loop_exit
    _

// kernel: unet_up_conv.2
$region0: #{unet_up_conv.2}
  #allocation0 [shape = 'u32[]', space=smem, size = 0x4, offset = 0x4, fixed_abs, tag = 'smem constant byte address 0x4 - core index']
  #allocation1 [shape = 'u32[144,128]{1,0:T(1,128)}', space=vmem, size = 0x12000, scoped, tag = 'internal scratch']
  %s0 = inlined_call_operand.vmem [shape: f32[2,16,16,72], index: 0, kind: input, shape index: {}]
  %s1 = inlined_call_operand.vmem [shape: f32[72,128], index: 1, kind: input, shape index: {}]
  %s2 = inlined_call_operand.vmem [shape: f32[2,16,16,128], index: 2, kind: output, shape index: {0}]
  %s3 = inlined_call_operand.vmem [shape: f32[2,1,128], index: 3, kind: output, shape index: {1}]
  %s4 = inlined_call_operand.vmem [shape: f32[2,1,128], index: 4, kind: output, shape index: {2}]
  %5 = xla_tuple %s2, %s3, %s4
  %s6 = sld [smem:[#allocation0]]
  $region61: #{unet_up_conv.2} parent=0
    _
  %s8 = ssub.s32 1, %s6
  %s9 = scalar_select 0, %s8, %s6
  loop: start=0, step=1, limit=4
  $region2: #{unet_up_conv.2} parent=0 // loop_pre_header
    _
  $region3: #{unet_up_conv.2} parent=0 // loop_header
    %s11 = sphi 0, %s15
    %p12 = scmp.ge.s32.totalorder %s11, 4
    %s18 = sphi 0, %s30
    %s19 = sphi 0, %s26
    %s20 = sphi 0, %s18
    %s21 = sphi 0, %s19
    %s22 = sphi 0, %s20
    %s23 = sphi 0, %s21
    %s35 = sphi 0, %s37
    %s38 = sphi 0, %s35
    %s39 = sphi 0, %s38
    %s55 = sphi 0, %s39
    %s59 = sphi 0, %s59
    %s61 = sphi 0, %s59
    %s62 = sphi 0, %s61
    %s76 = sphi 0, %s62
    %s84 = sphi 0, %s86
    %s87 = sphi 0, %s84
    %s88 = sphi 0, %s87
    %s104 = sphi 0, %s88
    %s110 = sphi 0, %s112
    %s113 = sphi 0, %s110
    %s114 = sphi 0, %s113
    %s130 = sphi 0, %s114
    %s136 = sphi 0, %s138
    %s139 = sphi 0, %s136
    %s140 = sphi 0, %s139
    %s156 = sphi 0, %s140
  $region4: #{unet_up_conv.2} parent=0 // loop_header_branch
    %14 = sbr.rel (%p12) target = $region8
  $region5: #{unet_up_conv.2} parent=0 // loop_body
    %s16 = ssub.s32 %s11, 1
    %s17 = ssub.s32 %s11, 2
    %s24 = sadd.s32 1, %s19
    %p25 = scmp.ge.s32.totalorder %s24, 1
    %s26 = scalar_select %p25, 0, %s24
    %s27 = sadd.s32 1, %s18
    %s28 = scalar_select %p25, %s27, %s18
    %p29 = scmp.ge.s32.totalorder %s28, 2
    %s30 = scalar_select %p29, 0, %s28
    %s31 = ssub.s32 %s18, %s30
    %s32 = ssub.s32 %s19, %s26
    %s33 = sor.u32 %s31, %s32
    %p34 = scmp.eq.s32.totalorder %s33, 0
    %s36 = sadd.s32 %s35, 1
    %s37 = scalar_select %p34, %s35, %s36
    %p40 = pneg %p34
    %p41 = scmp.eq.s32.totalorder %s11, 1
    %p42 = por %p40, %p41
    %p43 = scmp.ne.s32.totalorder %s35, %s38
    %p44 = scmp.eq.s32.totalorder %s11, 0
    %p45 = por %p43, %p44
    %p46 = scmp.ne.s32.totalorder %s35, %s38
    %p47 = scmp.eq.s32.totalorder %s16, 1
    %p48 = por %p46, %p47
    %p49 = scmp.ne.s32.totalorder %s38, %s39
    %p50 = scmp.eq.s32.totalorder %s16, 0
    %p51 = por %p49, %p50
    %p52 = scmp.ne.s32.totalorder %s38, %s39
    %p53 = scmp.eq.s32.totalorder %s17, 1
    %p54 = por %p52, %p53
    %p56 = scmp.ne.s32.totalorder %s39, %s55
    %p57 = scmp.eq.s32.totalorder %s17, 0
    %p58 = por %p56, %p57
    %s60 = sadd.s32 %s59, 1
    %p63 = scmp.eq.s32.totalorder %s11, 1
    %p64 = scmp.ne.s32.totalorder %s59, %s61
    %p65 = scmp.eq.s32.totalorder %s11, 0
    %p66 = por %p64, %p65
    %p67 = scmp.ne.s32.totalorder %s59, %s61
    %p68 = scmp.eq.s32.totalorder %s16, 1
    %p69 = por %p67, %p68
    %p70 = scmp.ne.s32.totalorder %s61, %s62
    %p71 = scmp.eq.s32.totalorder %s16, 0
    %p72 = por %p70, %p71
    %p73 = scmp.ne.s32.totalorder %s61, %s62
    %p74 = scmp.eq.s32.totalorder %s17, 1
    %p75 = por %p73, %p74
    %p77 = scmp.ne.s32.totalorder %s62, %s76
    %p78 = scmp.eq.s32.totalorder %s17, 0
    %p79 = por %p77, %p78
    %s80 = ssub.s32 %s18, %s30
    %s81 = ssub.s32 %s19, %s26
    %s82 = sor.u32 %s80, %s81
    %p83 = scmp.eq.s32.totalorder %s82, 0
    %s85 = sadd.s32 %s84, 1
    %s86 = scalar_select %p83, %s84, %s85
    %p89 = pneg %p83
    %p90 = scmp.eq.s32.totalorder %s11, 1
    %p91 = por %p89, %p90
    %p92 = scmp.ne.s32.totalorder %s84, %s87
    %p93 = scmp.eq.s32.totalorder %s11, 0
    %p94 = por %p92, %p93
    %p95 = scmp.ne.s32.totalorder %s84, %s87
    %p96 = scmp.eq.s32.totalorder %s16, 1
    %p97 = por %p95, %p96
    %p98 = scmp.ne.s32.totalorder %s87, %s88
    %p99 = scmp.eq.s32.totalorder %s16, 0
    %p100 = por %p98, %p99
    %p101 = scmp.ne.s32.totalorder %s87, %s88
    %p102 = scmp.eq.s32.totalorder %s17, 1
    %p103 = por %p101, %p102
    %p105 = scmp.ne.s32.totalorder %s88, %s104
    %p106 = scmp.eq.s32.totalorder %s17, 0
    %p107 = por %p105, %p106
    %s108 = ssub.s32 %s18, %s30
    %p109 = scmp.eq.s32.totalorder %s108, 0
    %s111 = sadd.s32 %s110, 1
    %s112 = scalar_select %p109, %s110, %s111
    %p115 = pneg %p109
    %p116 = scmp.eq.s32.totalorder %s11, 1
    %p117 = por %p115, %p116
    %p118 = scmp.ne.s32.totalorder %s110, %s113
    %p119 = scmp.eq.s32.totalorder %s11, 0
    %p120 = por %p118, %p119
    %p121 = scmp.ne.s32.totalorder %s110, %s113
    %p122 = scmp.eq.s32.totalorder %s16, 1
    %p123 = por %p121, %p122
    %p124 = scmp.ne.s32.totalorder %s113, %s114
    %p125 = scmp.eq.s32.totalorder %s16, 0
    %p126 = por %p124, %p125
    %p127 = scmp.ne.s32.totalorder %s113, %s114
    %p128 = scmp.eq.s32.totalorder %s17, 1
    %p129 = por %p127, %p128
    %p131 = scmp.ne.s32.totalorder %s114, %s130
    %p132 = scmp.eq.s32.totalorder %s17, 0
    %p133 = por %p131, %p132
    %s134 = ssub.s32 %s18, %s30
    %p135 = scmp.eq.s32.totalorder %s134, 0
    %s137 = sadd.s32 %s136, 1
    %s138 = scalar_select %p135, %s136, %s137
    %p141 = pneg %p135
    %p142 = scmp.eq.s32.totalorder %s11, 1
    %p143 = por %p141, %p142
    %p144 = scmp.ne.s32.totalorder %s136, %s139
    %p145 = scmp.eq.s32.totalorder %s11, 0
    %p146 = por %p144, %p145
    %p147 = scmp.ne.s32.totalorder %s136, %s139
    %p148 = scmp.eq.s32.totalorder %s16, 1
    %p149 = por %p147, %p148
    %p150 = scmp.ne.s32.totalorder %s139, %s140
    %p151 = scmp.eq.s32.totalorder %s16, 0
    %p152 = por %p150, %p151
    %p153 = scmp.ne.s32.totalorder %s139, %s140
    %p154 = scmp.eq.s32.totalorder %s17, 1
    %p155 = por %p153, %p154
    %p157 = scmp.ne.s32.totalorder %s140, %s156
    %p158 = scmp.eq.s32.totalorder %s17, 0
    %p159 = por %p157, %p158
    %p160 = scmp.le.s32.totalorder 1, %s11
    %p161 = scmp.lt.s32.totalorder %s11, 3
    %p162 = pnand %p160, %p161
    %p163 = pneg %p162
    // Predicated region
    $region9: #{unet_up_conv.2} parent=5 // pred_check
      _
    $region10: #{unet_up_conv.2} parent=5 // pred_check_branch
      %165 = sbr.rel (%p162) target = $region12
    $region11: #{unet_up_conv.2} parent=5 // pred_region
      %s166 = ssub.s32 %s11, 1
      // Predicated region
      $region13: #{unet_up_conv.2} parent=11 // pred_check
        %p167 = pneg %p72
      $region14: #{unet_up_conv.2} parent=11 // pred_check_branch
        %169 = sbr.rel (%p167) target = $region16
      $region15: #{unet_up_conv.2} parent=11 // pred_region
        _
      $region16: #{unet_up_conv.2} parent=11 // pred_fallthru
        _
    $region12: #{unet_up_conv.2} parent=5 // pred_fallthru
      _
    %p170 = scmp.lt.s32.totalorder %s11, 2
    // Predicated region
    $region17: #{unet_up_conv.2} parent=5 // pred_check
      %p171 = pneg %p170
    $region18: #{unet_up_conv.2} parent=5 // pred_check_branch
      %173 = sbr.rel (%p171) target = $region20
    $region19: #{unet_up_conv.2} parent=5 // pred_region
      // Predicated region
      $region21: #{unet_up_conv.2} parent=19 // pred_check
        %p174 = pneg %p45
      $region22: #{unet_up_conv.2} parent=19 // pred_check_branch
        %176 = sbr.rel (%p174) target = $region24
      $region23: #{unet_up_conv.2} parent=19 // pred_region
        %s177 = smul.u32 16, %s19
        %p178 = scmp.lt.s32.totalorder %s18, 1
        %s179 = scalar_select %p178, %s18, 1
        %p180 = scmp.lt.s32.totalorder %s177, 15
        %s181 = scalar_select %p180, %s177, 15
        %s182 = smul.addr %s181, 2
        %s183 = smul.addr %s179, 32
        %s184 = sadd.s32 %s182, %s183
        %s185 = smul.addr %s184, 8
        %s186 = scalar_lea.vmem %s0, %s185
        %s187 = smul.u32 16, %s19
      $region24: #{unet_up_conv.2} parent=19 // pred_fallthru
        _
    $region20: #{unet_up_conv.2} parent=5 // pred_fallthru
      _
    %p188 = scmp.le.s32.totalorder 1, %s11
    %p189 = scmp.lt.s32.totalorder %s11, 3
    %p190 = pnand %p188, %p189
    %p191 = pneg %p190
    // Predicated region
    $region25: #{unet_up_conv.2} parent=5 // pred_check
      _
    $region26: #{unet_up_conv.2} parent=5 // pred_check_branch
      %193 = sbr.rel (%p190) target = $region28
    $region27: #{unet_up_conv.2} parent=5 // pred_region
      %s194 = ssub.s32 %s11, 1
      %s195 = smul.u32 16, %s21
      %p196 = scmp.lt.s32.totalorder %s20, 1
      %s197 = scalar_select %p196, %s20, 1
      %p198 = scmp.lt.s32.totalorder %s195, 15
      %s199 = scalar_select %p198, %s195, 15
      %s200 = smul.addr %s199, 2
      %s201 = smul.addr %s197, 32
      %s202 = sadd.s32 %s200, %s201
      %s203 = smul.addr %s202, 8
      %s204 = scalar_lea.vmem %s0, %s203
      %p205 = pneg %p51
      %p206 = pneg %p48
      %p207 = pneg %p72
      %p208 = pneg %p69
      %p209 = pneg %p100
      %p210 = pneg %p97
      %s211 = smul.u32 16, %s21
      %p212 = scmp.lt.s32.totalorder %s20, 1
      %s213 = scalar_select %p212, %s20, 1
      %p214 = scmp.lt.s32.totalorder %s211, 15
      %s215 = scalar_select %p214, %s211, 15
      %s216 = smul.addr %s215, 2
      %s217 = smul.addr %s213, 32
      %s218 = sadd.s32 %s216, %s217
      %s219 = smul.addr %s218, 8
      %s220 = scalar_lea.vmem %s2, %s219
      %p221 = pneg %p126
      %p222 = pneg %p123
      %p223 = scmp.lt.s32.totalorder %s20, 1
      %s224 = scalar_select %p223, %s20, 1
      %s225 = scalar_lea.vmem %s3, %s224
      %p226 = pneg %p152
      %p227 = pneg %p149
      %p228 = scmp.lt.s32.totalorder %s20, 1
      %s229 = scalar_select %p228, %s20, 1
      %s230 = scalar_lea.vmem %s4, %s229
      %s231 = smul.u32 16, %s21
      %p232 = scmp.lt.s32.totalorder %s20, 1
      %s233 = scalar_select %p232, %s20, 1
      %p234 = scmp.lt.s32.totalorder %s231, 15
      %s235 = scalar_select %p234, %s231, 15
      %s236 = smul.addr %s235, 2
      %s237 = smul.addr %s233, 32
      %s238 = sadd.s32 %s236, %s237
      %s239 = smul.addr %s238, 8
      %s240 = scalar_lea.vmem %s0, %s239
      %s241 = smul.u32 16, %s21
      %s242 = smul.u32 16, %s21
      %p243 = scmp.lt.s32.totalorder %s20, 1
      %s244 = scalar_select %p243, %s20, 1
      %p245 = scmp.lt.s32.totalorder %s242, 15
      %s246 = scalar_select %p245, %s242, 15
      %s247 = smul.addr %s246, 2
      %s248 = smul.addr %s244, 32
      %s249 = sadd.s32 %s247, %s248
      %s250 = smul.addr %s249, 8
      %s251 = scalar_lea.vmem %s2, %s250
      %s252 = smul.u32 16, %s21
      %p253 = scmp.lt.s32.totalorder %s20, 1
      %s254 = scalar_select %p253, %s20, 1
      %s255 = scalar_lea.vmem %s3, %s254
      %p256 = scmp.lt.s32.totalorder %s20, 1
      %s257 = scalar_select %p256, %s20, 1
      %s258 = scalar_lea.vmem %s4, %s257
      %p259 = scmp.eq.s32.totalorder %s21, 0
      // Predicated region
      $region29: #{unet_up_conv.2} parent=27 // pred_check
        %p260 = pneg %p259
      $region30: #{unet_up_conv.2} parent=27 // pred_check_branch
        %262 = sbr.rel (%p260) target = $region32
      $region31: #{unet_up_conv.2} parent=27 // pred_region
        %263 = vst [vmem:[%s255] sm:$0x1] 0.0
        %264 = vst [vmem:[%s258] sm:$0x1] 0.0
      $region32: #{unet_up_conv.2} parent=27 // pred_fallthru
        _
      %v265 = vld [vmem:[%s240] sm:$0xff]
      %v266 = vld [vmem:[%s240 + $0x8] sm:$0xff]
      %v267 = vld [vmem:[%s240 + $0x10] sm:$0xff]
      %v268 = vld [vmem:[%s240 + $0x18] sm:$0xff]
      %v269 = vld [vmem:[%s240 + $0x20] sm:$0xff]
      %v270 = vld [vmem:[%s240 + $0x28] sm:$0xff]
      %v271 = vld [vmem:[%s240 + $0x30] sm:$0xff]
      %v272 = vld [vmem:[%s240 + $0x38] sm:$0xff]
      %v273 = vld [vmem:[%s240 + $0x40] sm:$0xff]
      %v274 = vld [vmem:[%s240 + $0x48] sm:$0xff]
      %v275 = vld [vmem:[%s240 + $0x50] sm:$0xff]
      %v276 = vld [vmem:[%s240 + $0x58] sm:$0xff]
      %v277 = vld [vmem:[%s240 + $0x60] sm:$0xff]
      %v278 = vld [vmem:[%s240 + $0x68] sm:$0xff]
      %v279 = vld [vmem:[%s240 + $0x70] sm:$0xff]
      %v280 = vld [vmem:[%s240 + $0x78] sm:$0xff]
      %v281 = vld [vmem:[%s240 + $0x80] sm:$0xff]
      %v282 = vld [vmem:[%s240 + $0x88] sm:$0xff]
      %v283 = vld [vmem:[%s240 + $0x90] sm:$0xff]
      %v284 = vld [vmem:[%s240 + $0x98] sm:$0xff]
      %v285 = vld [vmem:[%s240 + $0xa0] sm:$0xff]
      %v286 = vld [vmem:[%s240 + $0xa8] sm:$0xff]
      %v287 = vld [vmem:[%s240 + $0xb0] sm:$0xff]
      %v288 = vld [vmem:[%s240 + $0xb8] sm:$0xff]
      %v289 = vld [vmem:[%s240 + $0xc0] sm:$0xff]
      %v290 = vld [vmem:[%s240 + $0xc8] sm:$0xff]
      %v291 = vld [vmem:[%s240 + $0xd0] sm:$0xff]
      %v292 = vld [vmem:[%s240 + $0xd8] sm:$0xff]
      %v293 = vld [vmem:[%s240 + $0xe0] sm:$0xff]
      %v294 = vld [vmem:[%s240 + $0xe8] sm:$0xff]
      %v295 = vld [vmem:[%s240 + $0xf0] sm:$0xff]
      %v296 = vld [vmem:[%s240 + $0xf8] sm:$0xff]
      %v297 = vld [vmem:[%s1] sm:$0xff]
      %v298 = vld [vmem:[%s1 + $0x8] sm:$0xff]
      %v299 = vld [vmem:[%s1 + $0x10] sm:$0xff]
      %v300 = vld [vmem:[%s1 + $0x18] sm:$0xff]
      %v301 = vld [vmem:[%s1 + $0x20] sm:$0xff]
      %v302 = vld [vmem:[%s1 + $0x28] sm:$0xff]
      %v303 = vld [vmem:[%s1 + $0x30] sm:$0xff]
      %v304 = vld [vmem:[%s1 + $0x38] sm:$0xff]
      %v305 = vld [vmem:[%s1 + $0x40] sm:$0xff]
      %vm306 = vcmask 588800
      %v308 = vsel %vm306, %v265, 0
      %v311 = vsel %vm306, %v266, 0
      %v314 = vsel %vm306, %v267, 0
      %v317 = vsel %vm306, %v268, 0
      %v320 = vsel %vm306, %v269, 0
      %v323 = vsel %vm306, %v270, 0
      %v326 = vsel %vm306, %v271, 0
      %v329 = vsel %vm306, %v272, 0
      %v332 = vsel %vm306, %v273, 0
      %v335 = vsel %vm306, %v274, 0
      %v338 = vsel %vm306, %v275, 0
      %v341 = vsel %vm306, %v276, 0
      %v344 = vsel %vm306, %v277, 0
      %v347 = vsel %vm306, %v278, 0
      %v350 = vsel %vm306, %v279, 0
      %v353 = vsel %vm306, %v280, 0
      %v356 = vsel %vm306, %v281, 0
      %v359 = vsel %vm306, %v282, 0
      %v362 = vsel %vm306, %v283, 0
      %v365 = vsel %vm306, %v284, 0
      %v368 = vsel %vm306, %v285, 0
      %v371 = vsel %vm306, %v286, 0
      %v374 = vsel %vm306, %v287, 0
      %v377 = vsel %vm306, %v288, 0
      %v380 = vsel %vm306, %v289, 0
      %v383 = vsel %vm306, %v290, 0
      %v386 = vsel %vm306, %v291, 0
      %v389 = vsel %vm306, %v292, 0
      %v392 = vsel %vm306, %v293, 0
      %v395 = vsel %vm306, %v294, 0
      %v398 = vsel %vm306, %v295, 0
      %v401 = vsel %vm306, %v296, 0
      %403 = vmatprep.subr.mxu0 0.0
      %404 = vmatpush1.msra.mxu0 0.0
      %405 = vmatprep.subr.mxu0 0.0
      %406 = vmatpush1.msra.mxu0 0.0
      %407 = vmatprep.subr.mxu0 0.0
      %408 = vmatpush1.msra.mxu0 0.0
      %409 = vmatprep.subr.mxu0 0.0
      %410 = vmatpush1.msra.mxu0 0.0
      %411 = vmatprep.subr.mxu0 0.0
      %412 = vmatpush1.msra.mxu0 0.0
      %413 = vmatprep.subr.mxu0 0.0
      %414 = vmatpush1.msra.mxu0 0.0
      %415 = vmatprep.subr.mxu0 0.0
      %416 = vmatpush1.msra.mxu0 0.0
      %417 = vmatprep.subr.mxu0 0.0
      %418 = vmatpush1.msra.mxu0 %v305
      %419 = vmatprep.subr.mxu0 0.0
      %420 = vmatpush1.msra.mxu0 %v304
      %421 = vmatprep.subr.mxu0 0.0
      %422 = vmatpush1.msra.mxu0 %v303
      %423 = vmatprep.subr.mxu0 0.0
      %424 = vmatpush1.msra.mxu0 %v302
      %425 = vmatprep.subr.mxu0 0.0
      %426 = vmatpush1.msra.mxu0 %v301
      %427 = vmatprep.subr.mxu0 0.0
      %428 = vmatpush1.msra.mxu0 %v300
      %429 = vmatprep.subr.mxu0 0.0
      %430 = vmatpush1.msra.mxu0 %v299
      %431 = vmatprep.subr.mxu0 0.0
      %432 = vmatpush1.msra.mxu0 %v298
      %433 = vmatprep.subr.mxu0 0.0
      %434 = vmatpush1.msra.mxu0 %v297
      %435 = vmatprep.subr.mxu0 0.0
      %436 = vmatpush2.msra.mxu0 0.0
      %437 = vmatprep.subr.mxu0 0.0
      %438 = vmatpush2.msra.mxu0 0.0
      %439 = vmatprep.subr.mxu0 0.0
      %440 = vmatpush2.msra.mxu0 0.0
      %441 = vmatprep.subr.mxu0 0.0
      %442 = vmatpush2.msra.mxu0 0.0
      %443 = vmatprep.subr.mxu0 0.0
      %444 = vmatpush2.msra.mxu0 0.0
      %445 = vmatprep.subr.mxu0 0.0
      %446 = vmatpush2.msra.mxu0 0.0
      %447 = vmatprep.subr.mxu0 0.0
      %448 = vmatpush2.msra.mxu0 0.0
      %449 = vmatprep.subr.mxu0 0.0
      %450 = vmatpush2.msra.mxu0 0.0
      %451 = vmatprep.subr.mxu0 0.0
      %452 = vmatpush2.msra.mxu0 0.0
      %453 = vmatprep.subr.mxu0 0.0
      %454 = vmatpush2.msra.mxu0 0.0
      %455 = vmatprep.subr.mxu0 0.0
      %456 = vmatpush2.msra.mxu0 0.0
      %457 = vmatprep.subr.mxu0 0.0
      %458 = vmatpush2.msra.mxu0 0.0
      %459 = vmatprep.subr.mxu0 0.0
      %460 = vmatpush2.msra.mxu0 0.0
      %461 = vmatprep.subr.mxu0 0.0
      %462 = vmatpush2.msra.mxu0 0.0
      %463 = vmatprep.subr.mxu0 0.0
      %464 = vmatpush2.msra.mxu0 0.0
      %465 = vmatprep.subr.mxu0 0.0
      %466 = vmatpush2.msra.mxu0 0.0
      %467 = vmatprep.mubr.f32.mxu0 0.0
      %468 = vmatmul.mubr.f32.gmra.mxu0 %v308
      %v469 = vpop.f32.mrf.mxu0
      %v470 = vadd.f32 0.0, %v469
      %v471 = vpop.f32.mrf.mxu0
      %472 = vmatprep.mubr.f32.mxu0 0.0
      %473 = vmatmul.mubr.f32.gmra.mxu0 %v311
      %v474 = vpop.f32.mrf.mxu0
      %v475 = vadd.f32 0.0, %v474
      %v476 = vpop.f32.mrf.mxu0
      %477 = vmatprep.mubr.f32.mxu0 0.0
      %478 = vmatmul.mubr.f32.gmra.mxu0 %v314
      %v479 = vpop.f32.mrf.mxu0
      %v480 = vadd.f32 0.0, %v479
      %v481 = vpop.f32.mrf.mxu0
      %482 = vmatprep.mubr.f32.mxu0 0.0
      %483 = vmatmul.mubr.f32.gmra.mxu0 %v317
      %v484 = vpop.f32.mrf.mxu0
      %v485 = vadd.f32 0.0, %v484
      %v486 = vpop.f32.mrf.mxu0
      %487 = vmatprep.mubr.f32.mxu0 0.0
      %488 = vmatmul.mubr.f32.gmra.mxu0 %v320
      %v489 = vpop.f32.mrf.mxu0
      %v490 = vadd.f32 0.0, %v489
      %v491 = vpop.f32.mrf.mxu0
      %492 = vmatprep.mubr.f32.mxu0 0.0
      %493 = vmatmul.mubr.f32.gmra.mxu0 %v323
      %v494 = vpop.f32.mrf.mxu0
      %v495 = vadd.f32 0.0, %v494
      %v496 = vpop.f32.mrf.mxu0
      %497 = vmatprep.mubr.f32.mxu0 0.0
      %498 = vmatmul.mubr.f32.gmra.mxu0 %v326
      %v499 = vpop.f32.mrf.mxu0
      %v500 = vadd.f32 0.0, %v499
      %v501 = vpop.f32.mrf.mxu0
      %502 = vmatprep.mubr.f32.mxu0 0.0
      %503 = vmatmul.mubr.f32.gmra.mxu0 %v329
      %v504 = vpop.f32.mrf.mxu0
      %v505 = vadd.f32 0.0, %v504
      %v506 = vpop.f32.mrf.mxu0
      %507 = vmatprep.mubr.f32.mxu0 0.0
      %508 = vmatmul.mubr.f32.gmra.mxu0 %v332
      %v509 = vpop.f32.mrf.mxu0
      %v510 = vadd.f32 0.0, %v509
      %v511 = vpop.f32.mrf.mxu0
      %512 = vmatprep.mubr.f32.mxu0 0.0
      %513 = vmatmul.mubr.f32.gmra.mxu0 %v335
      %v514 = vpop.f32.mrf.mxu0
      %v515 = vadd.f32 0.0, %v514
      %v516 = vpop.f32.mrf.mxu0
      %517 = vmatprep.mubr.f32.mxu0 0.0
      %518 = vmatmul.mubr.f32.gmra.mxu0 %v338
      %v519 = vpop.f32.mrf.mxu0
      %v520 = vadd.f32 0.0, %v519
      %v521 = vpop.f32.mrf.mxu0
      %522 = vmatprep.mubr.f32.mxu0 0.0
      %523 = vmatmul.mubr.f32.gmra.mxu0 %v341
      %v524 = vpop.f32.mrf.mxu0
      %v525 = vadd.f32 0.0, %v524
      %v526 = vpop.f32.mrf.mxu0
      %527 = vmatprep.mubr.f32.mxu0 0.0
      %528 = vmatmul.mubr.f32.gmra.mxu0 %v344
      %v529 = vpop.f32.mrf.mxu0
      %v530 = vadd.f32 0.0, %v529
      %v531 = vpop.f32.mrf.mxu0
      %532 = vmatprep.mubr.f32.mxu0 0.0
      %533 = vmatmul.mubr.f32.gmra.mxu0 %v347
      %v534 = vpop.f32.mrf.mxu0
      %v535 = vadd.f32 0.0, %v534
      %v536 = vpop.f32.mrf.mxu0
      %537 = vmatprep.mubr.f32.mxu0 0.0
      %538 = vmatmul.mubr.f32.gmra.mxu0 %v350
      %v539 = vpop.f32.mrf.mxu0
      %v540 = vadd.f32 0.0, %v539
      %v541 = vpop.f32.mrf.mxu0
      %542 = vmatprep.mubr.f32.mxu0 0.0
      %543 = vmatmul.mubr.f32.gmra.mxu0 %v353
      %v544 = vpop.f32.mrf.mxu0
      %v545 = vadd.f32 0.0, %v544
      %v546 = vpop.f32.mrf.mxu0
      %547 = vmatprep.mubr.f32.mxu0 0.0
      %548 = vmatmul.mubr.f32.gmra.mxu0 %v356
      %v549 = vpop.f32.mrf.mxu0
      %v550 = vadd.f32 0.0, %v549
      %v551 = vpop.f32.mrf.mxu0
      %552 = vmatprep.mubr.f32.mxu0 0.0
      %553 = vmatmul.mubr.f32.gmra.mxu0 %v359
      %v554 = vpop.f32.mrf.mxu0
      %v555 = vadd.f32 0.0, %v554
      %v556 = vpop.f32.mrf.mxu0
      %557 = vmatprep.mubr.f32.mxu0 0.0
      %558 = vmatmul.mubr.f32.gmra.mxu0 %v362
      %v559 = vpop.f32.mrf.mxu0
      %v560 = vadd.f32 0.0, %v559
      %v561 = vpop.f32.mrf.mxu0
      %562 = vmatprep.mubr.f32.mxu0 0.0
      %563 = vmatmul.mubr.f32.gmra.mxu0 %v365
      %v564 = vpop.f32.mrf.mxu0
      %v565 = vadd.f32 0.0, %v564
      %v566 = vpop.f32.mrf.mxu0
      %567 = vmatprep.mubr.f32.mxu0 0.0
      %568 = vmatmul.mubr.f32.gmra.mxu0 %v368
      %v569 = vpop.f32.mrf.mxu0
      %v570 = vadd.f32 0.0, %v569
      %v571 = vpop.f32.mrf.mxu0
      %572 = vmatprep.mubr.f32.mxu0 0.0
      %573 = vmatmul.mubr.f32.gmra.mxu0 %v371
      %v574 = vpop.f32.mrf.mxu0
      %v575 = vadd.f32 0.0, %v574
      %v576 = vpop.f32.mrf.mxu0
      %577 = vmatprep.mubr.f32.mxu0 0.0
      %578 = vmatmul.mubr.f32.gmra.mxu0 %v374
      %v579 = vpop.f32.mrf.mxu0
      %v580 = vadd.f32 0.0, %v579
      %v581 = vpop.f32.mrf.mxu0
      %582 = vmatprep.mubr.f32.mxu0 0.0
      %583 = vmatmul.mubr.f32.gmra.mxu0 %v377
      %v584 = vpop.f32.mrf.mxu0
      %v585 = vadd.f32 0.0, %v584
      %v586 = vpop.f32.mrf.mxu0
      %587 = vmatprep.mubr.f32.mxu0 0.0
      %588 = vmatmul.mubr.f32.gmra.mxu0 %v380
      %v589 = vpop.f32.mrf.mxu0
      %v590 = vadd.f32 0.0, %v589
      %v591 = vpop.f32.mrf.mxu0
      %592 = vmatprep.mubr.f32.mxu0 0.0
      %593 = vmatmul.mubr.f32.gmra.mxu0 %v383
      %v594 = vpop.f32.mrf.mxu0
      %v595 = vadd.f32 0.0, %v594
      %v596 = vpop.f32.mrf.mxu0
      %597 = vmatprep.mubr.f32.mxu0 0.0
      %598 = vmatmul.mubr.f32.gmra.mxu0 %v386
      %v599 = vpop.f32.mrf.mxu0
      %v600 = vadd.f32 0.0, %v599
      %v601 = vpop.f32.mrf.mxu0
      %602 = vmatprep.mubr.f32.mxu0 0.0
      %603 = vmatmul.mubr.f32.gmra.mxu0 %v389
      %v604 = vpop.f32.mrf.mxu0
      %v605 = vadd.f32 0.0, %v604
      %v606 = vpop.f32.mrf.mxu0
      %607 = vmatprep.mubr.f32.mxu0 0.0
      %608 = vmatmul.mubr.f32.gmra.mxu0 %v392
      %v609 = vpop.f32.mrf.mxu0
      %v610 = vadd.f32 0.0, %v609
      %v611 = vpop.f32.mrf.mxu0
      %612 = vmatprep.mubr.f32.mxu0 0.0
      %613 = vmatmul.mubr.f32.gmra.mxu0 %v395
      %v614 = vpop.f32.mrf.mxu0
      %v615 = vadd.f32 0.0, %v614
      %v616 = vpop.f32.mrf.mxu0
      %617 = vmatprep.mubr.f32.mxu0 0.0
      %618 = vmatmul.mubr.f32.gmra.mxu0 %v398
      %v619 = vpop.f32.mrf.mxu0
      %v620 = vadd.f32 0.0, %v619
      %v621 = vpop.f32.mrf.mxu0
      %622 = vmatprep.mubr.f32.mxu0 0.0
      %623 = vmatmul.mubr.f32.gmra.mxu0 %v401
      %v624 = vpop.f32.mrf.mxu0
      %v625 = vadd.f32 0.0, %v624
      %v626 = vpop.f32.mrf.mxu0
      %627 = vdwg.mxu0
      %628 = vst [vmem:[%s251] sm:$0xff] %v470
      %629 = vst [vmem:[%s251 + $0x8] sm:$0xff] %v475
      %630 = vst [vmem:[%s251 + $0x10] sm:$0xff] %v480
      %631 = vst [vmem:[%s251 + $0x18] sm:$0xff] %v485
      %632 = vst [vmem:[%s251 + $0x20] sm:$0xff] %v490
      %633 = vst [vmem:[%s251 + $0x28] sm:$0xff] %v495
      %634 = vst [vmem:[%s251 + $0x30] sm:$0xff] %v500
      %635 = vst [vmem:[%s251 + $0x38] sm:$0xff] %v505
      %636 = vst [vmem:[%s251 + $0x40] sm:$0xff] %v510
      %637 = vst [vmem:[%s251 + $0x48] sm:$0xff] %v515
      %638 = vst [vmem:[%s251 + $0x50] sm:$0xff] %v520
      %639 = vst [vmem:[%s251 + $0x58] sm:$0xff] %v525
      %640 = vst [vmem:[%s251 + $0x60] sm:$0xff] %v530
      %641 = vst [vmem:[%s251 + $0x68] sm:$0xff] %v535
      %642 = vst [vmem:[%s251 + $0x70] sm:$0xff] %v540
      %643 = vst [vmem:[%s251 + $0x78] sm:$0xff] %v545
      %644 = vst [vmem:[%s251 + $0x80] sm:$0xff] %v550
      %645 = vst [vmem:[%s251 + $0x88] sm:$0xff] %v555
      %646 = vst [vmem:[%s251 + $0x90] sm:$0xff] %v560
      %647 = vst [vmem:[%s251 + $0x98] sm:$0xff] %v565
      %648 = vst [vmem:[%s251 + $0xa0] sm:$0xff] %v570
      %649 = vst [vmem:[%s251 + $0xa8] sm:$0xff] %v575
      %650 = vst [vmem:[%s251 + $0xb0] sm:$0xff] %v580
      %651 = vst [vmem:[%s251 + $0xb8] sm:$0xff] %v585
      %652 = vst [vmem:[%s251 + $0xc0] sm:$0xff] %v590
      %653 = vst [vmem:[%s251 + $0xc8] sm:$0xff] %v595
      %654 = vst [vmem:[%s251 + $0xd0] sm:$0xff] %v600
      %655 = vst [vmem:[%s251 + $0xd8] sm:$0xff] %v605
      %656 = vst [vmem:[%s251 + $0xe0] sm:$0xff] %v610
      %657 = vst [vmem:[%s251 + $0xe8] sm:$0xff] %v615
      %658 = vst [vmem:[%s251 + $0xf0] sm:$0xff] %v620
      %659 = vst [vmem:[%s251 + $0xf8] sm:$0xff] %v625
      %v660 = vld [vmem:[%s255] sm:$0x1]
      %v661 = vadd.f32 %v470, %v475
      %v662 = vadd.f32 %v661, %v480
      %v663 = vadd.f32 %v662, %v485
      %v664 = vadd.f32 %v663, %v490
      %v665 = vadd.f32 %v664, %v495
      %v666 = vadd.f32 %v665, %v500
      %v667 = vadd.f32 %v666, %v505
      %v668 = vadd.f32 %v667, %v510
      %v669 = vadd.f32 %v668, %v515
      %v670 = vadd.f32 %v669, %v520
      %v671 = vadd.f32 %v670, %v525
      %v672 = vadd.f32 %v671, %v530
      %v673 = vadd.f32 %v672, %v535
      %v674 = vadd.f32 %v673, %v540
      %v675 = vadd.f32 %v674, %v545
      %v676 = vadd.f32 %v675, %v550
      %v677 = vadd.f32 %v676, %v555
      %v678 = vadd.f32 %v677, %v560
      %v679 = vadd.f32 %v678, %v565
      %v680 = vadd.f32 %v679, %v570
      %v681 = vadd.f32 %v680, %v575
      %v682 = vadd.f32 %v681, %v580
      %v683 = vadd.f32 %v682, %v585
      %v684 = vadd.f32 %v683, %v590
      %v685 = vadd.f32 %v684, %v595
      %v686 = vadd.f32 %v685, %v600
      %v687 = vadd.f32 %v686, %v605
      %v688 = vadd.f32 %v687, %v610
      %v689 = vadd.f32 %v688, %v615
      %v690 = vadd.f32 %v689, %v620
      %v691 = vadd.f32 %v690, %v625
      %v692 = vrot.slane %v691, 4
      %v693 = vadd.f32 %v691, %v692
      %v694 = vrot.slane %v693, 2
      %v695 = vadd.f32 %v693, %v694
      %v696 = vrot.slane %v695, 1
      %v697 = vadd.f32 %v695, %v696
      %v698 = vadd.f32 %v660, %v697
      %699 = vst [vmem:[%s255] sm:$0x1] %v698
      %v700 = vld [vmem:[%s258] sm:$0x1]
      %v701 = vmul.f32 %v470, %v470
      %v702 = vmul.f32 %v475, %v475
      %v703 = vmul.f32 %v480, %v480
      %v704 = vmul.f32 %v485, %v485
      %v705 = vmul.f32 %v490, %v490
      %v706 = vmul.f32 %v495, %v495
      %v707 = vmul.f32 %v500, %v500
      %v708 = vmul.f32 %v505, %v505
      %v709 = vmul.f32 %v510, %v510
      %v710 = vmul.f32 %v515, %v515
      %v711 = vmul.f32 %v520, %v520
      %v712 = vmul.f32 %v525, %v525
      %v713 = vmul.f32 %v530, %v530
      %v714 = vmul.f32 %v535, %v535
      %v715 = vmul.f32 %v540, %v540
      %v716 = vmul.f32 %v545, %v545
      %v717 = vmul.f32 %v550, %v550
      %v718 = vmul.f32 %v555, %v555
      %v719 = vmul.f32 %v560, %v560
      %v720 = vmul.f32 %v565, %v565
      %v721 = vmul.f32 %v570, %v570
      %v722 = vmul.f32 %v575, %v575
      %v723 = vmul.f32 %v580, %v580
      %v724 = vmul.f32 %v585, %v585
      %v725 = vmul.f32 %v590, %v590
      %v726 = vmul.f32 %v595, %v595
      %v727 = vmul.f32 %v600, %v600
      %v728 = vmul.f32 %v605, %v605
      %v729 = vmul.f32 %v610, %v610
      %v730 = vmul.f32 %v615, %v615
      %v731 = vmul.f32 %v620, %v620
      %v732 = vmul.f32 %v625, %v625
      %v733 = vadd.f32 %v701, %v702
      %v734 = vadd.f32 %v733, %v703
      %v735 = vadd.f32 %v734, %v704
      %v736 = vadd.f32 %v735, %v705
      %v737 = vadd.f32 %v736, %v706
      %v738 = vadd.f32 %v737, %v707
      %v739 = vadd.f32 %v738, %v708
      %v740 = vadd.f32 %v739, %v709
      %v741 = vadd.f32 %v740, %v710
      %v742 = vadd.f32 %v741, %v711
      %v743 = vadd.f32 %v742, %v712
      %v744 = vadd.f32 %v743, %v713
      %v745 = vadd.f32 %v744, %v714
      %v746 = vadd.f32 %v745, %v715
      %v747 = vadd.f32 %v746, %v716
      %v748 = vadd.f32 %v747, %v717
      %v749 = vadd.f32 %v748, %v718
      %v750 = vadd.f32 %v749, %v719
      %v751 = vadd.f32 %v750, %v720
      %v752 = vadd.f32 %v751, %v721
      %v753 = vadd.f32 %v752, %v722
      %v754 = vadd.f32 %v753, %v723
      %v755 = vadd.f32 %v754, %v724
      %v756 = vadd.f32 %v755, %v725
      %v757 = vadd.f32 %v756, %v726
      %v758 = vadd.f32 %v757, %v727
      %v759 = vadd.f32 %v758, %v728
      %v760 = vadd.f32 %v759, %v729
      %v761 = vadd.f32 %v760, %v730
      %v762 = vadd.f32 %v761, %v731
      %v763 = vadd.f32 %v762, %v732
      %v764 = vrot.slane %v763, 4
      %v765 = vadd.f32 %v763, %v764
      %v766 = vrot.slane %v765, 2
      %v767 = vadd.f32 %v765, %v766
      %v768 = vrot.slane %v767, 1
      %v769 = vadd.f32 %v767, %v768
      %v770 = vadd.f32 %v700, %v769
      %771 = vst [vmem:[%s258] sm:$0x1] %v770
      %s772 = smul.u32 16, %s21
      %p773 = scmp.lt.s32.totalorder %s20, 1
      %s774 = scalar_select %p773, %s20, 1
      %p775 = scmp.lt.s32.totalorder %s772, 15
      %s776 = scalar_select %p775, %s772, 15
      %s777 = smul.addr %s776, 2
      %s778 = smul.addr %s774, 32
      %s779 = sadd.s32 %s777, %s778
      %s780 = smul.addr %s779, 8
      %s781 = scalar_lea.vmem %s2, %s780
      %p782 = scmp.lt.s32.totalorder %s20, 1
      %s783 = scalar_select %p782, %s20, 1
      %s784 = scalar_lea.vmem %s3, %s783
      %p785 = scmp.lt.s32.totalorder %s20, 1
      %s786 = scalar_select %p785, %s20, 1
      %s787 = scalar_lea.vmem %s4, %s786
      // Predicated region
      $region33: #{unet_up_conv.2} parent=27 // pred_check
        %p788 = pneg %p97
      $region34: #{unet_up_conv.2} parent=27 // pred_check_branch
        %790 = sbr.rel (%p788) target = $region36
      $region35: #{unet_up_conv.2} parent=27 // pred_region
        %s791 = smul.u32 16, %s21
      $region36: #{unet_up_conv.2} parent=27 // pred_fallthru
        _
      // Predicated region
      $region37: #{unet_up_conv.2} parent=27 // pred_check
        %p792 = pneg %p123
      $region38: #{unet_up_conv.2} parent=27 // pred_check_branch
        %794 = sbr.rel (%p792) target = $region40
      $region39: #{unet_up_conv.2} parent=27 // pred_region
        _
      $region40: #{unet_up_conv.2} parent=27 // pred_fallthru
        _
      // Predicated region
      $region41: #{unet_up_conv.2} parent=27 // pred_check
        %p795 = pneg %p149
      $region42: #{unet_up_conv.2} parent=27 // pred_check_branch
        %797 = sbr.rel (%p795) target = $region44
      $region43: #{unet_up_conv.2} parent=27 // pred_region
        _
      $region44: #{unet_up_conv.2} parent=27 // pred_fallthru
        _
    $region28: #{unet_up_conv.2} parent=5 // pred_fallthru
      _
    %p798 = scmp.le.s32.totalorder 2, %s11
    // Predicated region
    $region45: #{unet_up_conv.2} parent=5 // pred_check
      %p799 = pneg %p798
    $region46: #{unet_up_conv.2} parent=5 // pred_check_branch
      %801 = sbr.rel (%p799) target = $region48
    $region47: #{unet_up_conv.2} parent=5 // pred_region
      %s802 = ssub.s32 %s11, 2
      // Predicated region
      $region49: #{unet_up_conv.2} parent=47 // pred_check
        %p803 = pneg %p103
      $region50: #{unet_up_conv.2} parent=47 // pred_check_branch
        %805 = sbr.rel (%p803) target = $region52
      $region51: #{unet_up_conv.2} parent=47 // pred_region
        %s806 = smul.u32 16, %s23
        %p807 = scmp.lt.s32.totalorder %s22, 1
        %s808 = scalar_select %p807, %s22, 1
        %p809 = scmp.lt.s32.totalorder %s806, 15
        %s810 = scalar_select %p809, %s806, 15
        %s811 = smul.addr %s810, 2
        %s812 = smul.addr %s808, 32
        %s813 = sadd.s32 %s811, %s812
        %s814 = smul.addr %s813, 8
        %s815 = scalar_lea.vmem %s2, %s814
      $region52: #{unet_up_conv.2} parent=47 // pred_fallthru
        _
      // Predicated region
      $region53: #{unet_up_conv.2} parent=47 // pred_check
        %p816 = pneg %p129
      $region54: #{unet_up_conv.2} parent=47 // pred_check_branch
        %818 = sbr.rel (%p816) target = $region56
      $region55: #{unet_up_conv.2} parent=47 // pred_region
        %p819 = scmp.lt.s32.totalorder %s22, 1
        %s820 = scalar_select %p819, %s22, 1
        %s821 = scalar_lea.vmem %s3, %s820
      $region56: #{unet_up_conv.2} parent=47 // pred_fallthru
        _
      // Predicated region
      $region57: #{unet_up_conv.2} parent=47 // pred_check
        %p822 = pneg %p155
      $region58: #{unet_up_conv.2} parent=47 // pred_check_branch
        %824 = sbr.rel (%p822) target = $region60
      $region59: #{unet_up_conv.2} parent=47 // pred_region
        %p825 = scmp.lt.s32.totalorder %s22, 1
        %s826 = scalar_select %p825, %s22, 1
        %s827 = scalar_lea.vmem %s4, %s826
      $region60: #{unet_up_conv.2} parent=47 // pred_fallthru
        _
    $region48: #{unet_up_conv.2} parent=5 // pred_fallthru
      _
  $region6: #{unet_up_conv.2} parent=0 // loop_footer
    %s15 = sadd.s32 1, %s11
  $region7: #{unet_up_conv.2} parent=0 // loop_footer_branch
    %10 = sbr.rel target = $region3
  $region8: #{unet_up_conv.2} parent=0 // loop_exit
    _

</llo_original>
